<compile_context>
chip_gen: v6e
topology: v6e:2x2x1
jax: 0.10.0
libtpu: 0.0.40
codegen_flags: <defaults>
</compile_context>

<pallas_src>
import jax
import jax.numpy as jnp
from jax import lax
from jax.experimental import pallas as pl
from jax.experimental.pallas import tpu as pltpu


def _round_up(x, m):
    return ((x + m - 1) // m) * m


def _default_row_tile():
    """256 rows on v6e/v7x-class chips (256-wide MXU), 128 on v5e/older."""
    try:
        kind = jax.devices()[0].device_kind.lower()
    except Exception:
        return 256
    if any(tag in kind for tag in ("v2", "v3", "v4", "v5 lite", "v5e", "v5litepod")):
        return 128
    return 256


def _vmem_capacity_bytes():
    try:
        cap = getattr(pltpu.get_tpu_info(), "vmem_capacity_bytes", None)
        if cap:
            return int(cap)
    except Exception:
        pass
    return 64 * 1024 * 1024  # conservative fallback: v7x physical VMEM


def _supports_buffered():
    try:
        pl.BlockSpec((8, 128), lambda i: (0, 0), pipeline_mode=pl.Buffered(1))
        return True
    except Exception:
        return False


_HAS_BUFFERED = _supports_buffered()


def _estimate_vmem_bytes(tn, tk, L, Dp, k_tiles, w_itemsize):
    """Rough VMEM footprint of one kernel configuration (tiles + temporaries)."""
    w_bufs = 1 if (k_tiles == 1 and _HAS_BUFFERED) else 2
    w_bytes = w_bufs * L * tk * Dp * w_itemsize      # weight block buffer(s)
    ids_bytes = 2 * tn * max(L, 128) * 4             # lane-padded ids tiles, double-buffered
    out_bytes = 2 * tn * Dp * 4                      # f32 output tiles, double-buffered
    acc_bytes = tn * Dp * 4                          # f32 accumulator scratch
    tmp_bytes = 3 * tn * tk * 4                      # iota + compare + one-hot temporaries
    return w_bytes + ids_bytes + out_bytes + acc_bytes + tmp_bytes


def _multi_embedding_kernel(ids_ref, w_ref, out_ref, acc_ref):
    # ids_ref: (tn, L) int32 raw token ids; -1 marks a padded level.
    # w_ref:   (L, tk, Dp) weight chunk (whole table when k_tiles == 1).
    # out_ref: (tn, Dp) float32.
    # acc_ref: (tn, Dp) float32 scratch, accumulates across the token-chunk axis.
    j = pl.program_id(1)

    @pl.when(j == 0)
    def _init():
        acc_ref[...] = jnp.zeros_like(acc_ref)

    L, tk, _ = w_ref.shape
    tn = ids_ref.shape[0]
    # Shift ids into this chunk's local coordinates.  Padded (-1) levels and ids
    # outside [j*tk, (j+1)*tk) never match the iota and contribute zero.
    ids = ids_ref[...] - j * tk
    iota = lax.broadcasted_iota(jnp.int32, (tn, tk), 1)

    acc = acc_ref[...]
    for l in range(L):  # static unroll: L (number of quantizer levels) is tiny
        onehot = (iota == ids[:, l:l + 1]).astype(w_ref.dtype)   # banded one-hot, (tn, tk)
        acc = acc + jnp.dot(onehot, w_ref[l], preferred_element_type=jnp.float32)
    acc_ref[...] = acc

    @pl.when(j == pl.num_programs(1) - 1)
    def _finalize():
        out_ref[...] = acc_ref[...].astype(out_ref.dtype)


def multi_embedding_pallas(ids, w_prep, *, token_dim, tn, tk, vmem_limit_bytes):
    """ids: (N, L) int32, -1 = padded level.
       w_prep: (L, K_pad, Dp) with Dp % 128 == 0 and K_pad % tk == 0.
       Returns (N, token_dim) float32."""
    N, L = ids.shape
    Lw, K_pad, Dp = w_prep.shape
    assert Lw == L and Dp % 128 == 0 and K_pad % tk == 0 and tn % 8 == 0
    k_tiles = K_pad // tk

    n_pad = _round_up(max(N, 1), tn)
    if n_pad != N:
        ids = jnp.pad(ids, ((0, n_pad - N), (0, 0)), constant_values=-1)

    w_index = lambda i, j: (0, j, 0)

    def _run(weight_spec):
        return pl.pallas_call(
            _multi_embedding_kernel,
            out_shape=jax.ShapeDtypeStruct((n_pad, Dp), jnp.float32),
            grid_spec=pltpu.PrefetchScalarGridSpec(
                num_scalar_prefetch=0,
                grid=(n_pad // tn, k_tiles),
                in_specs=[
                    pl.BlockSpec((tn, L), lambda i, j: (i, 0)),
                    weight_spec,
                ],
                out_specs=pl.BlockSpec((tn, Dp), lambda i, j: (i, 0)),
                scratch_shapes=[pltpu.VMEM((tn, Dp), jnp.float32)],
            ),
            compiler_params=pltpu.CompilerParams(
                dimension_semantics=("parallel", "arbitrary"),
                vmem_limit_bytes=int(vmem_limit_bytes)),
        )(ids, w_prep)

    if k_tiles == 1 and _HAS_BUFFERED:
        # Constant block index -> table stays resident; a 2nd pipeline buffer is waste.
        try:
            out = _run(pl.BlockSpec((L, tk, Dp), w_index, pipeline_mode=pl.Buffered(1)))
        except Exception:
            out = _run(pl.BlockSpec((L, tk, Dp), w_index))  # default double buffering
    else:
        out = _run(pl.BlockSpec((L, tk, Dp), w_index))

    return out[:N, :token_dim]


class MultiEmbedding:
    """This embedding sums embeddings on different levels (Pallas-backed)."""

    def __init__(self, max_n_levels, n_tokens, token_dim, key,
                 weight_dtype=jnp.float32):
        self.max_n_levels = max_n_levels
        self.n_tokens = n_tokens
        self.token_dim = token_dim
        # Parameter kept in f32, matching torch.randn parameter semantics.
        self.weight = jax.random.normal(
            key, (max_n_levels, n_tokens, token_dim), dtype=jnp.float32)
        # Opt-in bf16 table: full-rate MXU + half the resident VMEM footprint,
        # at the cost of bf16 rounding of the weights (default stays f32-exact).
        self._compute_dtype = weight_dtype
        self._prepare()

    def _prepare(self):
        """Cache the lane-padded (and, if streaming, token-padded) table and pick
        the token-chunk size tk from the generation-aware VMEM budget.
        Re-run this if self.weight is mutated."""
        L, K, D = self.weight.shape
        Dp = _round_up(D, 128)
        w = self.weight.astype(self._compute_dtype)
        if Dp != D:
            w = jnp.pad(w, ((0, 0), (0, 0), (0, Dp - D)))
        itemsize = w.dtype.itemsize

        cap = _vmem_capacity_bytes()
        self._vmem_limit = int(cap * 0.8)
        self._budget = self._vmem_limit - (2 << 20)  # headroom for compiler scratch
        tn_hint = 512                                # largest row tile we might pick

        if _estimate_vmem_bytes(tn_hint, K, L, Dp, 1, itemsize) <= self._budget:
            tk, k_tiles = K, 1                       # whole table VMEM-resident (fast path)
        else:
            tk = None
            for cand in (2048, 1024, 512, 256, 128):
                if cand < K and _estimate_vmem_bytes(tn_hint, cand, L, Dp, 2, itemsize) <= self._budget:
                    tk = cand
                    break
            # TODO(synk): for tables too large even for tk=128 streaming (huge token_dim),
            # add token_dim tiling or a scalar-prefetch DMA-gather path.
            assert tk is not None, "embedding table too large for the streamed Pallas path"
            K_pad = _round_up(K, tk)
            k_tiles = K_pad // tk
            if K_pad != K:
                w = jnp.pad(w, ((0, 0), (0, K_pad - K), (0, 0)))  # zero rows, never matched

        self._w_prep = w
        self._tk = tk
        self._k_tiles = k_tiles
        self._Dp = Dp
        self._itemsize = itemsize
        self._base_tn = _default_row_tile()

    def _pick_row_tile(self, N):
        L = self.max_n_levels
        tn = self._base_tn
        # Large N: bigger row tiles amortize per-grid-step overhead (esp. v6e).
        if N >= 8 * 512 and _estimate_vmem_bytes(
                512, self._tk, L, self._Dp, self._k_tiles, self._itemsize) <= self._budget:
            tn = 512
        # Small N: ensure the (parallel) row axis has >= 2 steps so both of
        # v7x's TensorCores get work; negligible cost on single-TC chips.
        while tn > 16 and pl.cdiv(N, tn) < 2:
            tn //= 2
        return tn

    def __call__(self, x_list):
        if len(x_list) == 0:
            return []
        L = self.max_n_levels
        padded = []
        for xi in x_list:
            xi = jnp.asarray(xi, dtype=jnp.int32)
            n_i, l_i = xi.shape
            padded.append(jnp.pad(xi, ((0, 0), (0, L - l_i)), constant_values=-1))
        ids = jnp.concatenate(padded, axis=0)       # (N, L); -1 => zero contribution
        # NOTE: out-of-range ids (>= n_tokens) contribute zero here instead of
        # raising an index error like PyTorch would.
        out = multi_embedding_pallas(
            ids, self._w_prep, token_dim=self.token_dim,
            tn=self._pick_row_tile(int(ids.shape[0])), tk=self._tk,
            vmem_limit_bytes=self._vmem_limit)
        splits, off = [], 0
        for xi in x_list:
            n_i = int(xi.shape[0])
            splits.append(out[off:off + n_i])
            off += n_i
        return splits


if __name__ == "__main__":
    key = jax.random.PRNGKey(0)
    k_w, k_x1, k_x2 = jax.random.split(key, 3)

    max_n_levels, n_tokens, token_dim = 4, 128, 64
    emb = MultiEmbedding(max_n_levels, n_tokens, token_dim, key=k_w)

    # Two "sequences" with different numbers of quantizer levels.
    x1 = jax.random.randint(k_x1, (40, 2), 0, n_tokens, dtype=jnp.int32)
    x2 = jax.random.randint(k_x2, (88, 3), 0, n_tokens, dtype=jnp.int32)
    x_list = [x1, x2]

    out_list = emb(x_list)
    out_list = [jax.block_until_ready(o) for o in out_list]

    # Pure-JAX reference: gather + sum over valid levels.
    def ref_one(xi, w):
        l_i = xi.shape[1]
        return jnp.sum(w[jnp.arange(l_i)[None, :], xi, :], axis=1)

    ok = True
    for xi, oi in zip(x_list, out_list):
        ri = ref_one(xi, emb.weight)
        ok &= bool(jnp.allclose(oi, ri, atol=1e-4, rtol=1e-4))
        assert oi.shape == (xi.shape[0], token_dim)

    # Also exercise the streamed / k-tiled reduction path (used when the table
    # exceeds the VMEM residency budget) by forcing tk < n_tokens.
    ids_full = jnp.concatenate(
        [jnp.pad(x1, ((0, 0), (0, max_n_levels - x1.shape[1])), constant_values=-1),
         jnp.pad(x2, ((0, 0), (0, max_n_levels - x2.shape[1])), constant_values=-1)],
        axis=0)
    out_streamed = jax.block_until_ready(
        multi_embedding_pallas(ids_full, emb._w_prep, token_dim=token_dim,
                               tn=64, tk=64, vmem_limit_bytes=32 * 1024 * 1024))
    ref_full = jnp.concatenate([ref_one(x1, emb.weight), ref_one(x2, emb.weight)], axis=0)
    ok &= bool(jnp.allclose(out_streamed, ref_full, atol=1e-4, rtol=1e-4))

    if ok:
        print("KERNEL_OK")
</pallas_src>

<mosaic_0001>
module attributes {stable_mosaic.version = 11 : i64} {
  func.func @_multi_embedding_kernel(%arg0: i32, %arg1: i32, %arg2: memref<64x4xi32, #tpu.memory_space<vmem>>, %arg3: memref<4x128x128xf32, #tpu.memory_space<vmem>>, %arg4: memref<64x128xf32, #tpu.memory_space<vmem>>, %arg5: memref<64x128xf32, #tpu.memory_space<vmem>>) attributes {dimension_semantics = [#tpu.dimension_semantics<parallel>, #tpu.dimension_semantics<arbitrary>], iteration_bounds = array<i64: 2, 1>, scalar_prefetch = 0 : i64, scratch_operands = 1 : i64, tpu.core_type = #tpu.core_type<tc>, window_params = [{transform_indices = @transform_0, window_bounds = array<i64: 64, 4>}, {pipeline_mode = #tpu.pipeline_mode<synchronous>, transform_indices = @transform_1, window_bounds = array<i64: 4, 128, 128>}, {transform_indices = @transform_2, window_bounds = array<i64: 64, 128>}]} {
    %c0_i32 = arith.constant 0 : i32
    %0 = arith.cmpi eq, %arg1, %c0_i32 : i32
    %1 = arith.extui %0 : i1 to i32
    %c0_i32_0 = arith.constant 0 : i32
    %2 = arith.cmpi ne, %1, %c0_i32_0 : i32
    scf.if %2 {
      %cst_20 = arith.constant 0.000000e+00 : f32
      %49 = vector.broadcast %cst_20 : f32 to vector<64x128xf32>
      %c0_21 = arith.constant 0 : index
      %c0_22 = arith.constant 0 : index
      %50 = vector.load %arg5[%c0_21, %c0_22] : memref<64x128xf32, #tpu.memory_space<vmem>>, vector<64x128xf32>
      tpu.vector_store %arg5[%c0_21, %c0_22], %49 {strides = array<i32>} : memref<64x128xf32, #tpu.memory_space<vmem>>, vector<64x128xf32>,
    } else {
    }
    %c0 = arith.constant 0 : index
    %c0_1 = arith.constant 0 : index
    %3 = vector.load %arg2[%c0, %c0_1] : memref<64x4xi32, #tpu.memory_space<vmem>>, vector<64x4xi32>
    %c128_i32 = arith.constant 128 : i32
    %4 = arith.muli %arg1, %c128_i32 : i32
    %5 = vector.broadcast %4 : i32 to vector<64x4xi32>
    %6 = arith.subi %3, %5 : vector<64x4xi32>
    %7 = tpu.iota {dimensions = array<i32: 1>} : vector<64x128xi32>
    %c0_2 = arith.constant 0 : index
    %c0_3 = arith.constant 0 : index
    %8 = vector.load %arg5[%c0_2, %c0_3] : memref<64x128xf32, #tpu.memory_space<vmem>>, vector<64x128xf32>
    %9 = vector.extract_strided_slice %6 {offsets = [0, 0], sizes = [64, 1], strides = [1, 1]} : vector<64x4xi32> to vector<64x1xi32>
    %10 = vector.broadcast %9 : vector<64x1xi32> to vector<64x128xi32>
    %11 = arith.cmpi eq, %7, %10 : vector<64x128xi32>
    %12 = arith.extui %11 : vector<64x128xi1> to vector<64x128xi32>
    %13 = arith.sitofp %12 : vector<64x128xi32> to vector<64x128xf32>
    %c0_4 = arith.constant 0 : index
    %c0_5 = arith.constant 0 : index
    %c0_6 = arith.constant 0 : index
    %14 = vector.load %arg3[%c0_4, %c0_5, %c0_6] : memref<4x128x128xf32, #tpu.memory_space<vmem>>, vector<1x128x128xf32>
    %15 = vector.shape_cast %14 : vector<1x128x128xf32> to vector<128x128xf32>
    %cst = arith.constant dense<0.000000e+00> : vector<64x128xf32>
    %16 = tpu.matmul %13, %15, %cst {dimension_numbers = #tpu.dot_dimension_numbers<[1], [0], [0], [1], [0, 0, 1, 1], [], []>} : vector<64x128xf32>, vector<128x128xf32>, vector<64x128xf32> -> vector<64x128xf32>
    %17 = arith.addf %8, %16 : vector<64x128xf32>
    %18 = vector.extract_strided_slice %6 {offsets = [0, 1], sizes = [64, 1], strides = [1, 1]} : vector<64x4xi32> to vector<64x1xi32>
    %19 = vector.broadcast %18 : vector<64x1xi32> to vector<64x128xi32>
    %20 = arith.cmpi eq, %7, %19 : vector<64x128xi32>
    %21 = arith.extui %20 : vector<64x128xi1> to vector<64x128xi32>
    %22 = arith.sitofp %21 : vector<64x128xi32> to vector<64x128xf32>
    %c1 = arith.constant 1 : index
    %c0_7 = arith.constant 0 : index
    %c0_8 = arith.constant 0 : index
    %23 = vector.load %arg3[%c1, %c0_7, %c0_8] : memref<4x128x128xf32, #tpu.memory_space<vmem>>, vector<1x128x128xf32>
    %24 = vector.shape_cast %23 : vector<1x128x128xf32> to vector<128x128xf32>
    %cst_9 = arith.constant dense<0.000000e+00> : vector<64x128xf32>
    %25 = tpu.matmul %22, %24, %cst_9 {dimension_numbers = #tpu.dot_dimension_numbers<[1], [0], [0], [1], [0, 0, 1, 1], [], []>} : vector<64x128xf32>, vector<128x128xf32>, vector<64x128xf32> -> vector<64x128xf32>
    %26 = arith.addf %17, %25 : vector<64x128xf32>
    %27 = vector.extract_strided_slice %6 {offsets = [0, 2], sizes = [64, 1], strides = [1, 1]} : vector<64x4xi32> to vector<64x1xi32>
    %28 = vector.broadcast %27 : vector<64x1xi32> to vector<64x128xi32>
    %29 = arith.cmpi eq, %7, %28 : vector<64x128xi32>
    %30 = arith.extui %29 : vector<64x128xi1> to vector<64x128xi32>
    %31 = arith.sitofp %30 : vector<64x128xi32> to vector<64x128xf32>
    %c2 = arith.constant 2 : index
    %c0_10 = arith.constant 0 : index
    %c0_11 = arith.constant 0 : index
    %32 = vector.load %arg3[%c2, %c0_10, %c0_11] : memref<4x128x128xf32, #tpu.memory_space<vmem>>, vector<1x128x128xf32>
    %33 = vector.shape_cast %32 : vector<1x128x128xf32> to vector<128x128xf32>
    %cst_12 = arith.constant dense<0.000000e+00> : vector<64x128xf32>
    %34 = tpu.matmul %31, %33, %cst_12 {dimension_numbers = #tpu.dot_dimension_numbers<[1], [0], [0], [1], [0, 0, 1, 1], [], []>} : vector<64x128xf32>, vector<128x128xf32>, vector<64x128xf32> -> vector<64x128xf32>
    %35 = arith.addf %26, %34 : vector<64x128xf32>
    %36 = vector.extract_strided_slice %6 {offsets = [0, 3], sizes = [64, 1], strides = [1, 1]} : vector<64x4xi32> to vector<64x1xi32>
    %37 = vector.broadcast %36 : vector<64x1xi32> to vector<64x128xi32>
    %38 = arith.cmpi eq, %7, %37 : vector<64x128xi32>
    %39 = arith.extui %38 : vector<64x128xi1> to vector<64x128xi32>
    %40 = arith.sitofp %39 : vector<64x128xi32> to vector<64x128xf32>
    %c3 = arith.constant 3 : index
    %c0_13 = arith.constant 0 : index
    %c0_14 = arith.constant 0 : index
    %41 = vector.load %arg3[%c3, %c0_13, %c0_14] : memref<4x128x128xf32, #tpu.memory_space<vmem>>, vector<1x128x128xf32>
    %42 = vector.shape_cast %41 : vector<1x128x128xf32> to vector<128x128xf32>
    %cst_15 = arith.constant dense<0.000000e+00> : vector<64x128xf32>
    %43 = tpu.matmul %40, %42, %cst_15 {dimension_numbers = #tpu.dot_dimension_numbers<[1], [0], [0], [1], [0, 0, 1, 1], [], []>} : vector<64x128xf32>, vector<128x128xf32>, vector<64x128xf32> -> vector<64x128xf32>
    %44 = arith.addf %35, %43 : vector<64x128xf32>
    %c0_16 = arith.constant 0 : index
    %c0_17 = arith.constant 0 : index
    %45 = vector.load %arg5[%c0_16, %c0_17] : memref<64x128xf32, #tpu.memory_space<vmem>>, vector<64x128xf32>
    tpu.vector_store %arg5[%c0_16, %c0_17], %44 {strides = array<i32>} : memref<64x128xf32, #tpu.memory_space<vmem>>, vector<64x128xf32>,
    %c0_i32_18 = arith.constant 0 : i32
    %46 = arith.cmpi eq, %arg1, %c0_i32_18 : i32
    %47 = arith.extui %46 : i1 to i32
    %c0_i32_19 = arith.constant 0 : i32
    %48 = arith.cmpi ne, %47, %c0_i32_19 : i32
    scf.if %48 {
      %c0_20 = arith.constant 0 : index
      %c0_21 = arith.constant 0 : index
      %49 = vector.load %arg5[%c0_20, %c0_21] : memref<64x128xf32, #tpu.memory_space<vmem>>, vector<64x128xf32>
      %c0_22 = arith.constant 0 : index
      %c0_23 = arith.constant 0 : index
      %50 = vector.load %arg4[%c0_22, %c0_23] : memref<64x128xf32, #tpu.memory_space<vmem>>, vector<64x128xf32>
      tpu.vector_store %arg4[%c0_22, %c0_23], %49 {strides = array<i32>} : memref<64x128xf32, #tpu.memory_space<vmem>>, vector<64x128xf32>,
    } else {
    }
    return
  }
  func.func @transform_0(%arg0: i32, %arg1: i32) -> (i32, i32) {
    %c0_i32 = arith.constant 0 : i32
    %c0_i32_0 = arith.constant 0 : i32
    return %arg0, %c0_i32 : i32, i32
  }
  func.func @transform_1(%arg0: i32, %arg1: i32) -> (i32, i32, i32) {
    %c0_i32 = arith.constant 0 : i32
    %c0_i32_0 = arith.constant 0 : i32
    %c0_i32_1 = arith.constant 0 : i32
    return %c0_i32, %arg1, %c0_i32_0 : i32, i32, i32
  }
  func.func @transform_2(%arg0: i32, %arg1: i32) -> (i32, i32) {
    %c0_i32 = arith.constant 0 : i32
    %c0_i32_0 = arith.constant 0 : i32
    return %arg0, %c0_i32 : i32, i32
  }
}

module attributes {stable_mosaic.version = 11 : i64} {
  func.func @_multi_embedding_kernel(%arg0: i32, %arg1: i32, %arg2: memref<64x4xi32, #tpu.memory_space<vmem>>, %arg3: memref<4x128x128xf32, #tpu.memory_space<vmem>>, %arg4: memref<64x128xf32, #tpu.memory_space<vmem>>, %arg5: memref<64x128xf32, #tpu.memory_space<vmem>>) attributes {dimension_semantics = [#tpu.dimension_semantics<parallel>, #tpu.dimension_semantics<arbitrary>], iteration_bounds = array<i64: 2, 1>, scalar_prefetch = 0 : i64, scratch_operands = 1 : i64, tpu.core_type = #tpu.core_type<tc>, window_params = [{transform_indices = @transform_0, window_bounds = array<i64: 64, 4>}, {transform_indices = @transform_1, window_bounds = array<i64: 4, 128, 128>}, {transform_indices = @transform_2, window_bounds = array<i64: 64, 128>}]} {
    %c0_i32 = arith.constant 0 : i32
    %0 = arith.cmpi eq, %arg1, %c0_i32 : i32
    %1 = arith.extui %0 : i1 to i32
    %c0_i32_0 = arith.constant 0 : i32
    %2 = arith.cmpi ne, %1, %c0_i32_0 : i32
    scf.if %2 {
      %cst_20 = arith.constant 0.000000e+00 : f32
      %49 = vector.broadcast %cst_20 : f32 to vector<64x128xf32>
      %c0_21 = arith.constant 0 : index
      %c0_22 = arith.constant 0 : index
      %50 = vector.load %arg5[%c0_21, %c0_22] : memref<64x128xf32, #tpu.memory_space<vmem>>, vector<64x128xf32>
      tpu.vector_store %arg5[%c0_21, %c0_22], %49 {strides = array<i32>} : memref<64x128xf32, #tpu.memory_space<vmem>>, vector<64x128xf32>,
    } else {
    }
    %c0 = arith.constant 0 : index
    %c0_1 = arith.constant 0 : index
    %3 = vector.load %arg2[%c0, %c0_1] : memref<64x4xi32, #tpu.memory_space<vmem>>, vector<64x4xi32>
    %c128_i32 = arith.constant 128 : i32
    %4 = arith.muli %arg1, %c128_i32 : i32
    %5 = vector.broadcast %4 : i32 to vector<64x4xi32>
    %6 = arith.subi %3, %5 : vector<64x4xi32>
    %7 = tpu.iota {dimensions = array<i32: 1>} : vector<64x128xi32>
    %c0_2 = arith.constant 0 : index
    %c0_3 = arith.constant 0 : index
    %8 = vector.load %arg5[%c0_2, %c0_3] : memref<64x128xf32, #tpu.memory_space<vmem>>, vector<64x128xf32>
    %9 = vector.extract_strided_slice %6 {offsets = [0, 0], sizes = [64, 1], strides = [1, 1]} : vector<64x4xi32> to vector<64x1xi32>
    %10 = vector.broadcast %9 : vector<64x1xi32> to vector<64x128xi32>
    %11 = arith.cmpi eq, %7, %10 : vector<64x128xi32>
    %12 = arith.extui %11 : vector<64x128xi1> to vector<64x128xi32>
    %13 = arith.sitofp %12 : vector<64x128xi32> to vector<64x128xf32>
    %c0_4 = arith.constant 0 : index
    %c0_5 = arith.constant 0 : index
    %c0_6 = arith.constant 0 : index
    %14 = vector.load %arg3[%c0_4, %c0_5, %c0_6] : memref<4x128x128xf32, #tpu.memory_space<vmem>>, vector<1x128x128xf32>
    %15 = vector.shape_cast %14 : vector<1x128x128xf32> to vector<128x128xf32>
    %cst = arith.constant dense<0.000000e+00> : vector<64x128xf32>
    %16 = tpu.matmul %13, %15, %cst {dimension_numbers = #tpu.dot_dimension_numbers<[1], [0], [0], [1], [0, 0, 1, 1], [], []>} : vector<64x128xf32>, vector<128x128xf32>, vector<64x128xf32> -> vector<64x128xf32>
    %17 = arith.addf %8, %16 : vector<64x128xf32>
    %18 = vector.extract_strided_slice %6 {offsets = [0, 1], sizes = [64, 1], strides = [1, 1]} : vector<64x4xi32> to vector<64x1xi32>
    %19 = vector.broadcast %18 : vector<64x1xi32> to vector<64x128xi32>
    %20 = arith.cmpi eq, %7, %19 : vector<64x128xi32>
    %21 = arith.extui %20 : vector<64x128xi1> to vector<64x128xi32>
    %22 = arith.sitofp %21 : vector<64x128xi32> to vector<64x128xf32>
    %c1 = arith.constant 1 : index
    %c0_7 = arith.constant 0 : index
    %c0_8 = arith.constant 0 : index
    %23 = vector.load %arg3[%c1, %c0_7, %c0_8] : memref<4x128x128xf32, #tpu.memory_space<vmem>>, vector<1x128x128xf32>
    %24 = vector.shape_cast %23 : vector<1x128x128xf32> to vector<128x128xf32>
    %cst_9 = arith.constant dense<0.000000e+00> : vector<64x128xf32>
    %25 = tpu.matmul %22, %24, %cst_9 {dimension_numbers = #tpu.dot_dimension_numbers<[1], [0], [0], [1], [0, 0, 1, 1], [], []>} : vector<64x128xf32>, vector<128x128xf32>, vector<64x128xf32> -> vector<64x128xf32>
    %26 = arith.addf %17, %25 : vector<64x128xf32>
    %27 = vector.extract_strided_slice %6 {offsets = [0, 2], sizes = [64, 1], strides = [1, 1]} : vector<64x4xi32> to vector<64x1xi32>
    %28 = vector.broadcast %27 : vector<64x1xi32> to vector<64x128xi32>
    %29 = arith.cmpi eq, %7, %28 : vector<64x128xi32>
    %30 = arith.extui %29 : vector<64x128xi1> to vector<64x128xi32>
    %31 = arith.sitofp %30 : vector<64x128xi32> to vector<64x128xf32>
    %c2 = arith.constant 2 : index
    %c0_10 = arith.constant 0 : index
    %c0_11 = arith.constant 0 : index
    %32 = vector.load %arg3[%c2, %c0_10, %c0_11] : memref<4x128x128xf32, #tpu.memory_space<vmem>>, vector<1x128x128xf32>
    %33 = vector.shape_cast %32 : vector<1x128x128xf32> to vector<128x128xf32>
    %cst_12 = arith.constant dense<0.000000e+00> : vector<64x128xf32>
    %34 = tpu.matmul %31, %33, %cst_12 {dimension_numbers = #tpu.dot_dimension_numbers<[1], [0], [0], [1], [0, 0, 1, 1], [], []>} : vector<64x128xf32>, vector<128x128xf32>, vector<64x128xf32> -> vector<64x128xf32>
    %35 = arith.addf %26, %34 : vector<64x128xf32>
    %36 = vector.extract_strided_slice %6 {offsets = [0, 3], sizes = [64, 1], strides = [1, 1]} : vector<64x4xi32> to vector<64x1xi32>
    %37 = vector.broadcast %36 : vector<64x1xi32> to vector<64x128xi32>
    %38 = arith.cmpi eq, %7, %37 : vector<64x128xi32>
    %39 = arith.extui %38 : vector<64x128xi1> to vector<64x128xi32>
    %40 = arith.sitofp %39 : vector<64x128xi32> to vector<64x128xf32>
    %c3 = arith.constant 3 : index
    %c0_13 = arith.constant 0 : index
    %c0_14 = arith.constant 0 : index
    %41 = vector.load %arg3[%c3, %c0_13, %c0_14] : memref<4x128x128xf32, #tpu.memory_space<vmem>>, vector<1x128x128xf32>
    %42 = vector.shape_cast %41 : vector<1x128x128xf32> to vector<128x128xf32>
    %cst_15 = arith.constant dense<0.000000e+00> : vector<64x128xf32>
    %43 = tpu.matmul %40, %42, %cst_15 {dimension_numbers = #tpu.dot_dimension_numbers<[1], [0], [0], [1], [0, 0, 1, 1], [], []>} : vector<64x128xf32>, vector<128x128xf32>, vector<64x128xf32> -> vector<64x128xf32>
    %44 = arith.addf %35, %43 : vector<64x128xf32>
    %c0_16 = arith.constant 0 : index
    %c0_17 = arith.constant 0 : index
    %45 = vector.load %arg5[%c0_16, %c0_17] : memref<64x128xf32, #tpu.memory_space<vmem>>, vector<64x128xf32>
    tpu.vector_store %arg5[%c0_16, %c0_17], %44 {strides = array<i32>} : memref<64x128xf32, #tpu.memory_space<vmem>>, vector<64x128xf32>,
    %c0_i32_18 = arith.constant 0 : i32
    %46 = arith.cmpi eq, %arg1, %c0_i32_18 : i32
    %47 = arith.extui %46 : i1 to i32
    %c0_i32_19 = arith.constant 0 : i32
    %48 = arith.cmpi ne, %47, %c0_i32_19 : i32
    scf.if %48 {
      %c0_20 = arith.constant 0 : index
      %c0_21 = arith.constant 0 : index
      %49 = vector.load %arg5[%c0_20, %c0_21] : memref<64x128xf32, #tpu.memory_space<vmem>>, vector<64x128xf32>
      %c0_22 = arith.constant 0 : index
      %c0_23 = arith.constant 0 : index
      %50 = vector.load %arg4[%c0_22, %c0_23] : memref<64x128xf32, #tpu.memory_space<vmem>>, vector<64x128xf32>
      tpu.vector_store %arg4[%c0_22, %c0_23], %49 {strides = array<i32>} : memref<64x128xf32, #tpu.memory_space<vmem>>, vector<64x128xf32>,
    } else {
    }
    return
  }
  func.func @transform_0(%arg0: i32, %arg1: i32) -> (i32, i32) {
    %c0_i32 = arith.constant 0 : i32
    %c0_i32_0 = arith.constant 0 : i32
    return %arg0, %c0_i32 : i32, i32
  }
  func.func @transform_1(%arg0: i32, %arg1: i32) -> (i32, i32, i32) {
    %c0_i32 = arith.constant 0 : i32
    %c0_i32_0 = arith.constant 0 : i32
    %c0_i32_1 = arith.constant 0 : i32
    return %c0_i32, %arg1, %c0_i32_0 : i32, i32, i32
  }
  func.func @transform_2(%arg0: i32, %arg1: i32) -> (i32, i32) {
    %c0_i32 = arith.constant 0 : i32
    %c0_i32_0 = arith.constant 0 : i32
    return %arg0, %c0_i32 : i32, i32
  }
}

</mosaic_0001>

<llo_original>
// kernel: tpu_custom_call.1
$region0: #{tpu_custom_call.1}
  #allocation0 [shape = 'u32[]', space=smem, size = 0x4, offset = 0x4, fixed_abs, tag = 'smem constant byte address 0x4 - core index']
  #allocation1 [shape = 'u32[144,128]{1,0:T(1,128)}', space=vmem, size = 0x12000, scoped, tag = 'internal scratch']
  #allocation2 [shape = 'f32[64,128]{1,0:T(8,128)}', space=vmem, size = 0x8000, scoped, tag = 'scratch operand']
  %s0 = inlined_call_operand.vmem [shape: s32[128,4], index: 0, kind: input, shape index: {}]
  %s1 = inlined_call_operand.hbm [shape: f32[4,128,128], index: 1, kind: input, shape index: {}]
  %s2 = inlined_call_operand.hbm [shape: f32[128,128], index: 2, kind: output, shape index: {}]
  %s3 = sld [smem:[#allocation0]]
  $region53: #{tpu_custom_call.1} parent=0
    _
  %s5 = ssub.s32 1, %s3
  %s6 = scalar_select 0, %s5, %s3
  $region1: #{tpu_custom_call.1} parent=0
    #allocation3 [shape = 'u8[262144]{0}', space=vmem, size = 0x40000, scoped, tag = 'input window, operand 1, single buffered']
    #allocation4 [shape = 's32[2]{0}', space=sflag, size = 0x8, scoped, tag = 'scoped memory for tpu_custom_call.1']
    #allocation5 [shape = 's32[2]{0}', space=sflag, size = 0x8, scoped, tag = 'scoped memory for tpu_custom_call.1']
    #allocation6 [shape = 'u8[65536]{0}', space=vmem, size = 0x10000, scoped, tag = 'output window, operand 0']
    %7 = vsyncpa [#allocation4], 0
    %8 = vsyncpa [#allocation5], 0
    %s9 = scalar_lea.sflag [#allocation5], 1
    %10 = vsyncpa %s9, 0
    loop: start=0, step=1, limit=4
    $region2: #{tpu_custom_call.1} parent=1 // loop_pre_header
      _
    $region3: #{tpu_custom_call.1} parent=1 // loop_header
      %s12 = sphi 0, %s16
      %p13 = scmp.ge.s32.totalorder %s12, 4
      %s19 = sphi 0, %s31
      %s20 = sphi 0, %s27
      %s21 = sphi 0, %s19
      %s22 = sphi 0, %s20
      %s23 = sphi 0, %s21
      %s24 = sphi 0, %s22
      %s34 = sphi 0, %s36
      %s37 = sphi 0, %s34
      %s38 = sphi 0, %s37
      %s54 = sphi 0, %s38
      %s60 = sphi 0, %s62
      %s63 = sphi 0, %s60
      %s64 = sphi 0, %s63
      %s80 = sphi 0, %s64
      %s86 = sphi 0, %s88
      %s89 = sphi 0, %s86
      %s90 = sphi 0, %s89
      %s106 = sphi 0, %s90
    $region4: #{tpu_custom_call.1} parent=1 // loop_header_branch
      %15 = sbr.rel (%p13) target = $region8
    $region5: #{tpu_custom_call.1} parent=1 // loop_body
      %s17 = ssub.s32 %s12, 1
      %s18 = ssub.s32 %s12, 2
      %s25 = sadd.s32 1, %s20
      %p26 = scmp.ge.s32.totalorder %s25, 1
      %s27 = scalar_select %p26, 0, %s25
      %s28 = sadd.s32 1, %s19
      %s29 = scalar_select %p26, %s28, %s19
      %p30 = scmp.ge.s32.totalorder %s29, 2
      %s31 = scalar_select %p30, 0, %s29
      %s32 = ssub.s32 %s19, %s31
      %p33 = scmp.eq.s32.totalorder %s32, 0
      %s35 = sadd.s32 %s34, 1
      %s36 = scalar_select %p33, %s34, %s35
      %p39 = pneg %p33
      %p40 = scmp.eq.s32.totalorder %s12, 1
      %p41 = por %p39, %p40
      %p42 = scmp.ne.s32.totalorder %s34, %s37
      %p43 = scmp.eq.s32.totalorder %s12, 0
      %p44 = por %p42, %p43
      %p45 = scmp.ne.s32.totalorder %s34, %s37
      %p46 = scmp.eq.s32.totalorder %s17, 1
      %p47 = por %p45, %p46
      %p48 = scmp.ne.s32.totalorder %s37, %s38
      %p49 = scmp.eq.s32.totalorder %s17, 0
      %p50 = por %p48, %p49
      %p51 = scmp.ne.s32.totalorder %s37, %s38
      %p52 = scmp.eq.s32.totalorder %s18, 1
      %p53 = por %p51, %p52
      %p55 = scmp.ne.s32.totalorder %s38, %s54
      %p56 = scmp.eq.s32.totalorder %s18, 0
      %p57 = por %p55, %p56
      %s58 = ssub.s32 %s20, %s27
      %p59 = scmp.eq.s32.totalorder %s58, 0
      %s61 = sadd.s32 %s60, 1
      %s62 = scalar_select %p59, %s60, %s61
      %p65 = pneg %p59
      %p66 = scmp.eq.s32.totalorder %s12, 1
      %p67 = por %p65, %p66
      %p68 = scmp.ne.s32.totalorder %s60, %s63
      %p69 = scmp.eq.s32.totalorder %s12, 0
      %p70 = por %p68, %p69
      %p71 = scmp.ne.s32.totalorder %s60, %s63
      %p72 = scmp.eq.s32.totalorder %s17, 1
      %p73 = por %p71, %p72
      %p74 = scmp.ne.s32.totalorder %s63, %s64
      %p75 = scmp.eq.s32.totalorder %s17, 0
      %p76 = por %p74, %p75
      %p77 = scmp.ne.s32.totalorder %s63, %s64
      %p78 = scmp.eq.s32.totalorder %s18, 1
      %p79 = por %p77, %p78
      %p81 = scmp.ne.s32.totalorder %s64, %s80
      %p82 = scmp.eq.s32.totalorder %s18, 0
      %p83 = por %p81, %p82
      %s84 = ssub.s32 %s19, %s31
      %p85 = scmp.eq.s32.totalorder %s84, 0
      %s87 = sadd.s32 %s86, 1
      %s88 = scalar_select %p85, %s86, %s87
      %p91 = pneg %p85
      %p92 = scmp.eq.s32.totalorder %s12, 1
      %p93 = por %p91, %p92
      %p94 = scmp.ne.s32.totalorder %s86, %s89
      %p95 = scmp.eq.s32.totalorder %s12, 0
      %p96 = por %p94, %p95
      %p97 = scmp.ne.s32.totalorder %s86, %s89
      %p98 = scmp.eq.s32.totalorder %s17, 1
      %p99 = por %p97, %p98
      %p100 = scmp.ne.s32.totalorder %s89, %s90
      %p101 = scmp.eq.s32.totalorder %s17, 0
      %p102 = por %p100, %p101
      %p103 = scmp.ne.s32.totalorder %s89, %s90
      %p104 = scmp.eq.s32.totalorder %s18, 1
      %p105 = por %p103, %p104
      %p107 = scmp.ne.s32.totalorder %s90, %s106
      %p108 = scmp.eq.s32.totalorder %s18, 0
      %p109 = por %p107, %p108
      %p110 = scmp.le.s32.totalorder 1, %s12
      %p111 = scmp.lt.s32.totalorder %s12, 3
      %p112 = pnand %p110, %p111
      %p113 = pneg %p112
      // Predicated region
      $region9: #{tpu_custom_call.1} parent=5 // pred_check
        _
      $region10: #{tpu_custom_call.1} parent=5 // pred_check_branch
        %115 = sbr.rel (%p112) target = $region12
      $region11: #{tpu_custom_call.1} parent=5 // pred_region
        %s116 = ssub.s32 %s12, 1
        // Predicated region
        $region13: #{tpu_custom_call.1} parent=11 // pred_check
          %p117 = pneg %p76
        $region14: #{tpu_custom_call.1} parent=11 // pred_check_branch
          %119 = sbr.rel (%p117) target = $region16
        $region15: #{tpu_custom_call.1} parent=11 // pred_region
          %s120 = smul.u32 16, %s22
          %s122 = ssub.s32 8192, 8192
          %123 = vsyncadd [#allocation4], %s122
          %s124 = smul.addr %s120, 128
          %s125 = scalar_lea.hbm %s1, %s124
          %s126 = sshll.u32 [#allocation3], 4
          %s127 = int_to_ptr.vmem [resolvable:$true] %s126
          %132 = dma.hbm_to_vmem [thread:$0]  %s125, 8192, %s127, [#allocation4], 128, 128, 8
        $region16: #{tpu_custom_call.1} parent=11 // pred_fallthru
          _
      $region12: #{tpu_custom_call.1} parent=5 // pred_fallthru
        _
      %p133 = scmp.lt.s32.totalorder %s12, 2
      // Predicated region
      $region17: #{tpu_custom_call.1} parent=5 // pred_check
        %p134 = pneg %p133
      $region18: #{tpu_custom_call.1} parent=5 // pred_check_branch
        %136 = sbr.rel (%p134) target = $region20
      $region19: #{tpu_custom_call.1} parent=5 // pred_region
        // Predicated region
        $region21: #{tpu_custom_call.1} parent=19 // pred_check
          %p137 = pneg %p44
        $region22: #{tpu_custom_call.1} parent=19 // pred_check_branch
          %139 = sbr.rel (%p137) target = $region24
        $region23: #{tpu_custom_call.1} parent=19 // pred_region
          %s140 = smul.u32 8, %s19
          %p141 = scmp.lt.s32.totalorder %s140, 15
          %s142 = scalar_select %p141, %s140, 15
          %s143 = smul.addr %s142, 8
          %s144 = scalar_lea.vmem %s0, %s143
          %s145 = smul.u32 8, %s19
        $region24: #{tpu_custom_call.1} parent=19 // pred_fallthru
          _
      $region20: #{tpu_custom_call.1} parent=5 // pred_fallthru
        _
      %p146 = scmp.le.s32.totalorder 1, %s12
      %p147 = scmp.lt.s32.totalorder %s12, 3
      %p148 = pnand %p146, %p147
      %p149 = pneg %p148
      // Predicated region
      $region25: #{tpu_custom_call.1} parent=5 // pred_check
        _
      $region26: #{tpu_custom_call.1} parent=5 // pred_check_branch
        %151 = sbr.rel (%p148) target = $region28
      $region27: #{tpu_custom_call.1} parent=5 // pred_region
        %s152 = ssub.s32 %s12, 1
        // Predicated region
        $region29: #{tpu_custom_call.1} parent=27 // pred_check
          %p153 = pneg %p76
        $region30: #{tpu_custom_call.1} parent=27 // pred_check_branch
          %155 = sbr.rel (%p153) target = $region32
        $region31: #{tpu_custom_call.1} parent=27 // pred_region
          %156 = dma.done [#allocation4], 8192
        $region32: #{tpu_custom_call.1} parent=27 // pred_fallthru
          _
        %s157 = smul.u32 8, %s21
        %p158 = scmp.lt.s32.totalorder %s157, 15
        %s159 = scalar_select %p158, %s157, 15
        %s160 = smul.addr %s159, 8
        %s161 = scalar_lea.vmem %s0, %s160
        %p162 = pneg %p50
        %p163 = pneg %p47
        %p164 = pneg %p76
        %p165 = pneg %p73
        %p166 = pneg %p102
        %p167 = pneg %p99
        %s168 = sand.u32 %s89, 1
        %s169 = scalar_lea.sflag [#allocation5], %s168
        %s170 = sand.u32 %s89, 1
        %s171 = smul.addr %s170, 64
        %s172 = scalar_lea.vmem [#allocation6], %s171
        %s173 = smul.u32 8, %s21
        %p174 = scmp.lt.s32.totalorder %s173, 15
        %s175 = scalar_select %p174, %s173, 15
        %s176 = smul.addr %s175, 8
        %s177 = scalar_lea.vmem %s0, %s176
        %s178 = smul.u32 8, %s21
        %s179 = smul.u32 16, %s22
        %s180 = smul.u32 8, %s21
        %p181 = scmp.eq.s32.totalorder %s22, 0
        // Predicated region
        $region33: #{tpu_custom_call.1} parent=27 // pred_check
          %p182 = pneg %p181
        $region34: #{tpu_custom_call.1} parent=27 // pred_check_branch
          %184 = sbr.rel (%p182) target = $region36
        $region35: #{tpu_custom_call.1} parent=27 // pred_region
          %185 = vst [vmem:[#allocation2] sm:$0xff] 0.0
          %186 = vst [vmem:[#allocation2 + $0x8] sm:$0xff] 0.0
          %187 = vst [vmem:[#allocation2 + $0x10] sm:$0xff] 0.0
          %188 = vst [vmem:[#allocation2 + $0x18] sm:$0xff] 0.0
          %189 = vst [vmem:[#allocation2 + $0x20] sm:$0xff] 0.0
          %190 = vst [vmem:[#allocation2 + $0x28] sm:$0xff] 0.0
          %191 = vst [vmem:[#allocation2 + $0x30] sm:$0xff] 0.0
          %192 = vst [vmem:[#allocation2 + $0x38] sm:$0xff] 0.0
        $region36: #{tpu_custom_call.1} parent=27 // pred_fallthru
          _
        %v193 = vld [vmem:[%s177] sm:$0xff]
        %v194 = vld [vmem:[%s177 + $0x8] sm:$0xff]
        %v195 = vld [vmem:[%s177 + $0x10] sm:$0xff]
        %v196 = vld [vmem:[%s177 + $0x18] sm:$0xff]
        %v197 = vld [vmem:[%s177 + $0x20] sm:$0xff]
        %v198 = vld [vmem:[%s177 + $0x28] sm:$0xff]
        %v199 = vld [vmem:[%s177 + $0x30] sm:$0xff]
        %v200 = vld [vmem:[%s177 + $0x38] sm:$0xff]
        %s201 = smul.u32 %s22, 128
        %v202 = vstv %s201
        %v203 = vsub.s32 %v193, %v202
        %v204 = vsub.s32 %v194, %v202
        %v205 = vsub.s32 %v195, %v202
        %v206 = vsub.s32 %v196, %v202
        %v207 = vsub.s32 %v197, %v202
        %v208 = vsub.s32 %v198, %v202
        %v209 = vsub.s32 %v199, %v202
        %v210 = vsub.s32 %v200, %v202
        %v211 = vlaneseq
        %v212 = vand.u32 %v211, 127
        %v213 = vld [vmem:[#allocation2] sm:$0xff]
        %v214 = vld [vmem:[#allocation2 + $0x8] sm:$0xff]
        %v215 = vld [vmem:[#allocation2 + $0x10] sm:$0xff]
        %v216 = vld [vmem:[#allocation2 + $0x18] sm:$0xff]
        %v217 = vld [vmem:[#allocation2 + $0x20] sm:$0xff]
        %v218 = vld [vmem:[#allocation2 + $0x28] sm:$0xff]
        %v219 = vld [vmem:[#allocation2 + $0x30] sm:$0xff]
        %v220 = vld [vmem:[#allocation2 + $0x38] sm:$0xff]
        %221 = vset.pattern.permute.xlu0 0
        %222 = vperm.xlu0 %221, %v203
        %v223 = vpop.permute.xlu0 %222
        %224 = vset.pattern.permute.xlu0 0
        %225 = vperm.xlu0 %224, %v204
        %v226 = vpop.permute.xlu0 %225
        %227 = vset.pattern.permute.xlu0 0
        %228 = vperm.xlu0 %227, %v205
        %v229 = vpop.permute.xlu0 %228
        %230 = vset.pattern.permute.xlu0 0
        %231 = vperm.xlu0 %230, %v206
        %v232 = vpop.permute.xlu0 %231
        %233 = vset.pattern.permute.xlu0 0
        %234 = vperm.xlu0 %233, %v207
        %v235 = vpop.permute.xlu0 %234
        %236 = vset.pattern.permute.xlu0 0
        %237 = vperm.xlu0 %236, %v208
        %v238 = vpop.permute.xlu0 %237
        %239 = vset.pattern.permute.xlu0 0
        %240 = vperm.xlu0 %239, %v209
        %v241 = vpop.permute.xlu0 %240
        %242 = vset.pattern.permute.xlu0 0
        %243 = vperm.xlu0 %242, %v210
        %v244 = vpop.permute.xlu0 %243
        %vm245 = vcmp.eq.s32.totalorder %v212, %v223
        %vm246 = vcmp.eq.s32.totalorder %v212, %v226
        %vm247 = vcmp.eq.s32.totalorder %v212, %v229
        %vm248 = vcmp.eq.s32.totalorder %v212, %v232
        %vm249 = vcmp.eq.s32.totalorder %v212, %v235
        %vm250 = vcmp.eq.s32.totalorder %v212, %v238
        %vm251 = vcmp.eq.s32.totalorder %v212, %v241
        %vm252 = vcmp.eq.s32.totalorder %v212, %v244
        %v253 = vsel %vm245, 1, 0
        %v254 = vsel %vm246, 1, 0
        %v255 = vsel %vm247, 1, 0
        %v256 = vsel %vm248, 1, 0
        %v257 = vsel %vm249, 1, 0
        %v258 = vsel %vm250, 1, 0
        %v259 = vsel %vm251, 1, 0
        %v260 = vsel %vm252, 1, 0
        %v261 = vcvt.s32.f32 %v253
        %v262 = vcvt.s32.f32 %v254
        %v263 = vcvt.s32.f32 %v255
        %v264 = vcvt.s32.f32 %v256
        %v265 = vcvt.s32.f32 %v257
        %v266 = vcvt.s32.f32 %v258
        %v267 = vcvt.s32.f32 %v259
        %v268 = vcvt.s32.f32 %v260
        %v269 = vld [vmem:[#allocation3] sm:$0xff]
        %v270 = vld [vmem:[#allocation3 + $0x8] sm:$0xff]
        %v271 = vld [vmem:[#allocation3 + $0x10] sm:$0xff]
        %v272 = vld [vmem:[#allocation3 + $0x18] sm:$0xff]
        %v273 = vld [vmem:[#allocation3 + $0x20] sm:$0xff]
        %v274 = vld [vmem:[#allocation3 + $0x28] sm:$0xff]
        %v275 = vld [vmem:[#allocation3 + $0x30] sm:$0xff]
        %v276 = vld [vmem:[#allocation3 + $0x38] sm:$0xff]
        %v277 = vld [vmem:[#allocation3 + $0x40] sm:$0xff]
        %v278 = vld [vmem:[#allocation3 + $0x48] sm:$0xff]
        %v279 = vld [vmem:[#allocation3 + $0x50] sm:$0xff]
        %v280 = vld [vmem:[#allocation3 + $0x58] sm:$0xff]
        %v281 = vld [vmem:[#allocation3 + $0x60] sm:$0xff]
        %v282 = vld [vmem:[#allocation3 + $0x68] sm:$0xff]
        %v283 = vld [vmem:[#allocation3 + $0x70] sm:$0xff]
        %v284 = vld [vmem:[#allocation3 + $0x78] sm:$0xff]
        %285 = vmatprep.subr.mxu0 0.0
        %286 = vmatpush1.msra.mxu0 %v284
        %287 = vmatprep.subr.mxu0 0.0
        %288 = vmatpush1.msra.mxu0 %v283
        %289 = vmatprep.subr.mxu0 0.0
        %290 = vmatpush1.msra.mxu0 %v282
        %291 = vmatprep.subr.mxu0 0.0
        %292 = vmatpush1.msra.mxu0 %v281
        %293 = vmatprep.subr.mxu0 0.0
        %294 = vmatpush1.msra.mxu0 %v280
        %295 = vmatprep.subr.mxu0 0.0
        %296 = vmatpush1.msra.mxu0 %v279
        %297 = vmatprep.subr.mxu0 0.0
        %298 = vmatpush1.msra.mxu0 %v278
        %299 = vmatprep.subr.mxu0 0.0
        %300 = vmatpush1.msra.mxu0 %v277
        %301 = vmatprep.subr.mxu0 0.0
        %302 = vmatpush1.msra.mxu0 %v276
        %303 = vmatprep.subr.mxu0 0.0
        %304 = vmatpush1.msra.mxu0 %v275
        %305 = vmatprep.subr.mxu0 0.0
        %306 = vmatpush1.msra.mxu0 %v274
        %307 = vmatprep.subr.mxu0 0.0
        %308 = vmatpush1.msra.mxu0 %v273
        %309 = vmatprep.subr.mxu0 0.0
        %310 = vmatpush1.msra.mxu0 %v272
        %311 = vmatprep.subr.mxu0 0.0
        %312 = vmatpush1.msra.mxu0 %v271
        %313 = vmatprep.subr.mxu0 0.0
        %314 = vmatpush1.msra.mxu0 %v270
        %315 = vmatprep.subr.mxu0 0.0
        %316 = vmatpush1.msra.mxu0 %v269
        %317 = vmatprep.subr.mxu0 0.0
        %318 = vmatpush2.msra.mxu0 0.0
        %319 = vmatprep.subr.mxu0 0.0
        %320 = vmatpush2.msra.mxu0 0.0
        %321 = vmatprep.subr.mxu0 0.0
        %322 = vmatpush2.msra.mxu0 0.0
        %323 = vmatprep.subr.mxu0 0.0
        %324 = vmatpush2.msra.mxu0 0.0
        %325 = vmatprep.subr.mxu0 0.0
        %326 = vmatpush2.msra.mxu0 0.0
        %327 = vmatprep.subr.mxu0 0.0
        %328 = vmatpush2.msra.mxu0 0.0
        %329 = vmatprep.subr.mxu0 0.0
        %330 = vmatpush2.msra.mxu0 0.0
        %331 = vmatprep.subr.mxu0 0.0
        %332 = vmatpush2.msra.mxu0 0.0
        %333 = vmatprep.subr.mxu0 0.0
        %334 = vmatpush2.msra.mxu0 0.0
        %335 = vmatprep.subr.mxu0 0.0
        %336 = vmatpush2.msra.mxu0 0.0
        %337 = vmatprep.subr.mxu0 0.0
        %338 = vmatpush2.msra.mxu0 0.0
        %339 = vmatprep.subr.mxu0 0.0
        %340 = vmatpush2.msra.mxu0 0.0
        %341 = vmatprep.subr.mxu0 0.0
        %342 = vmatpush2.msra.mxu0 0.0
        %343 = vmatprep.subr.mxu0 0.0
        %344 = vmatpush2.msra.mxu0 0.0
        %345 = vmatprep.subr.mxu0 0.0
        %346 = vmatpush2.msra.mxu0 0.0
        %347 = vmatprep.subr.mxu0 0.0
        %348 = vmatpush2.msra.mxu0 0.0
        %349 = vmatprep.mubr.f32.mxu0 0.0
        %350 = vmatmul.mubr.f32.gmra.mxu0 %v261
        %v351 = vpop.f32.mrf.mxu0
        %v352 = vadd.f32 0.0, %v351
        %v353 = vpop.f32.mrf.mxu0
        %354 = vmatprep.mubr.f32.mxu0 0.0
        %355 = vmatmul.mubr.f32.gmra.mxu0 %v262
        %v356 = vpop.f32.mrf.mxu0
        %v357 = vadd.f32 0.0, %v356
        %v358 = vpop.f32.mrf.mxu0
        %359 = vmatprep.mubr.f32.mxu0 0.0
        %360 = vmatmul.mubr.f32.gmra.mxu0 %v263
        %v361 = vpop.f32.mrf.mxu0
        %v362 = vadd.f32 0.0, %v361
        %v363 = vpop.f32.mrf.mxu0
        %364 = vmatprep.mubr.f32.mxu0 0.0
        %365 = vmatmul.mubr.f32.gmra.mxu0 %v264
        %v366 = vpop.f32.mrf.mxu0
        %v367 = vadd.f32 0.0, %v366
        %v368 = vpop.f32.mrf.mxu0
        %369 = vmatprep.mubr.f32.mxu0 0.0
        %370 = vmatmul.mubr.f32.gmra.mxu0 %v265
        %v371 = vpop.f32.mrf.mxu0
        %v372 = vadd.f32 0.0, %v371
        %v373 = vpop.f32.mrf.mxu0
        %374 = vmatprep.mubr.f32.mxu0 0.0
        %375 = vmatmul.mubr.f32.gmra.mxu0 %v266
        %v376 = vpop.f32.mrf.mxu0
        %v377 = vadd.f32 0.0, %v376
        %v378 = vpop.f32.mrf.mxu0
        %379 = vmatprep.mubr.f32.mxu0 0.0
        %380 = vmatmul.mubr.f32.gmra.mxu0 %v267
        %v381 = vpop.f32.mrf.mxu0
        %v382 = vadd.f32 0.0, %v381
        %v383 = vpop.f32.mrf.mxu0
        %384 = vmatprep.mubr.f32.mxu0 0.0
        %385 = vmatmul.mubr.f32.gmra.mxu0 %v268
        %v386 = vpop.f32.mrf.mxu0
        %v387 = vadd.f32 0.0, %v386
        %v388 = vpop.f32.mrf.mxu0
        %389 = vdwg.mxu0
        %v390 = vadd.f32 %v213, %v352
        %v391 = vadd.f32 %v214, %v357
        %v392 = vadd.f32 %v215, %v362
        %v393 = vadd.f32 %v216, %v367
        %v394 = vadd.f32 %v217, %v372
        %v395 = vadd.f32 %v218, %v377
        %v396 = vadd.f32 %v219, %v382
        %v397 = vadd.f32 %v220, %v387
        %398 = vset.pattern.permute.xlu0 1
        %399 = vperm.xlu0 %398, %v203
        %v400 = vpop.permute.xlu0 %399
        %401 = vset.pattern.permute.xlu0 1
        %402 = vperm.xlu0 %401, %v204
        %v403 = vpop.permute.xlu0 %402
        %404 = vset.pattern.permute.xlu0 1
        %405 = vperm.xlu0 %404, %v205
        %v406 = vpop.permute.xlu0 %405
        %407 = vset.pattern.permute.xlu0 1
        %408 = vperm.xlu0 %407, %v206
        %v409 = vpop.permute.xlu0 %408
        %410 = vset.pattern.permute.xlu0 1
        %411 = vperm.xlu0 %410, %v207
        %v412 = vpop.permute.xlu0 %411
        %413 = vset.pattern.permute.xlu0 1
        %414 = vperm.xlu0 %413, %v208
        %v415 = vpop.permute.xlu0 %414
        %416 = vset.pattern.permute.xlu0 1
        %417 = vperm.xlu0 %416, %v209
        %v418 = vpop.permute.xlu0 %417
        %419 = vset.pattern.permute.xlu0 1
        %420 = vperm.xlu0 %419, %v210
        %v421 = vpop.permute.xlu0 %420
        %vm422 = vcmp.eq.s32.totalorder %v212, %v400
        %vm423 = vcmp.eq.s32.totalorder %v212, %v403
        %vm424 = vcmp.eq.s32.totalorder %v212, %v406
        %vm425 = vcmp.eq.s32.totalorder %v212, %v409
        %vm426 = vcmp.eq.s32.totalorder %v212, %v412
        %vm427 = vcmp.eq.s32.totalorder %v212, %v415
        %vm428 = vcmp.eq.s32.totalorder %v212, %v418
        %vm429 = vcmp.eq.s32.totalorder %v212, %v421
        %v430 = vsel %vm422, 1, 0
        %v431 = vsel %vm423, 1, 0
        %v432 = vsel %vm424, 1, 0
        %v433 = vsel %vm425, 1, 0
        %v434 = vsel %vm426, 1, 0
        %v435 = vsel %vm427, 1, 0
        %v436 = vsel %vm428, 1, 0
        %v437 = vsel %vm429, 1, 0
        %v438 = vcvt.s32.f32 %v430
        %v439 = vcvt.s32.f32 %v431
        %v440 = vcvt.s32.f32 %v432
        %v441 = vcvt.s32.f32 %v433
        %v442 = vcvt.s32.f32 %v434
        %v443 = vcvt.s32.f32 %v435
        %v444 = vcvt.s32.f32 %v436
        %v445 = vcvt.s32.f32 %v437
        %s446 = scalar_lea.vmem [#allocation3], 128
        %v447 = vld [vmem:[%s446] sm:$0xff]
        %v448 = vld [vmem:[%s446 + $0x8] sm:$0xff]
        %v449 = vld [vmem:[%s446 + $0x10] sm:$0xff]
        %v450 = vld [vmem:[%s446 + $0x18] sm:$0xff]
        %v451 = vld [vmem:[%s446 + $0x20] sm:$0xff]
        %v452 = vld [vmem:[%s446 + $0x28] sm:$0xff]
        %v453 = vld [vmem:[%s446 + $0x30] sm:$0xff]
        %v454 = vld [vmem:[%s446 + $0x38] sm:$0xff]
        %v455 = vld [vmem:[%s446 + $0x40] sm:$0xff]
        %v456 = vld [vmem:[%s446 + $0x48] sm:$0xff]
        %v457 = vld [vmem:[%s446 + $0x50] sm:$0xff]
        %v458 = vld [vmem:[%s446 + $0x58] sm:$0xff]
        %v459 = vld [vmem:[%s446 + $0x60] sm:$0xff]
        %v460 = vld [vmem:[%s446 + $0x68] sm:$0xff]
        %v461 = vld [vmem:[%s446 + $0x70] sm:$0xff]
        %v462 = vld [vmem:[%s446 + $0x78] sm:$0xff]
        %463 = vmatprep.subr.mxu0 0.0
        %464 = vmatpush1.msra.mxu0 %v462
        %465 = vmatprep.subr.mxu0 0.0
        %466 = vmatpush1.msra.mxu0 %v461
        %467 = vmatprep.subr.mxu0 0.0
        %468 = vmatpush1.msra.mxu0 %v460
        %469 = vmatprep.subr.mxu0 0.0
        %470 = vmatpush1.msra.mxu0 %v459
        %471 = vmatprep.subr.mxu0 0.0
        %472 = vmatpush1.msra.mxu0 %v458
        %473 = vmatprep.subr.mxu0 0.0
        %474 = vmatpush1.msra.mxu0 %v457
        %475 = vmatprep.subr.mxu0 0.0
        %476 = vmatpush1.msra.mxu0 %v456
        %477 = vmatprep.subr.mxu0 0.0
        %478 = vmatpush1.msra.mxu0 %v455
        %479 = vmatprep.subr.mxu0 0.0
        %480 = vmatpush1.msra.mxu0 %v454
        %481 = vmatprep.subr.mxu0 0.0
        %482 = vmatpush1.msra.mxu0 %v453
        %483 = vmatprep.subr.mxu0 0.0
        %484 = vmatpush1.msra.mxu0 %v452
        %485 = vmatprep.subr.mxu0 0.0
        %486 = vmatpush1.msra.mxu0 %v451
        %487 = vmatprep.subr.mxu0 0.0
        %488 = vmatpush1.msra.mxu0 %v450
        %489 = vmatprep.subr.mxu0 0.0
        %490 = vmatpush1.msra.mxu0 %v449
        %491 = vmatprep.subr.mxu0 0.0
        %492 = vmatpush1.msra.mxu0 %v448
        %493 = vmatprep.subr.mxu0 0.0
        %494 = vmatpush1.msra.mxu0 %v447
        %495 = vmatprep.subr.mxu0 0.0
        %496 = vmatpush2.msra.mxu0 0.0
        %497 = vmatprep.subr.mxu0 0.0
        %498 = vmatpush2.msra.mxu0 0.0
        %499 = vmatprep.subr.mxu0 0.0
        %500 = vmatpush2.msra.mxu0 0.0
        %501 = vmatprep.subr.mxu0 0.0
        %502 = vmatpush2.msra.mxu0 0.0
        %503 = vmatprep.subr.mxu0 0.0
        %504 = vmatpush2.msra.mxu0 0.0
        %505 = vmatprep.subr.mxu0 0.0
        %506 = vmatpush2.msra.mxu0 0.0
        %507 = vmatprep.subr.mxu0 0.0
        %508 = vmatpush2.msra.mxu0 0.0
        %509 = vmatprep.subr.mxu0 0.0
        %510 = vmatpush2.msra.mxu0 0.0
        %511 = vmatprep.subr.mxu0 0.0
        %512 = vmatpush2.msra.mxu0 0.0
        %513 = vmatprep.subr.mxu0 0.0
        %514 = vmatpush2.msra.mxu0 0.0
        %515 = vmatprep.subr.mxu0 0.0
        %516 = vmatpush2.msra.mxu0 0.0
        %517 = vmatprep.subr.mxu0 0.0
        %518 = vmatpush2.msra.mxu0 0.0
        %519 = vmatprep.subr.mxu0 0.0
        %520 = vmatpush2.msra.mxu0 0.0
        %521 = vmatprep.subr.mxu0 0.0
        %522 = vmatpush2.msra.mxu0 0.0
        %523 = vmatprep.subr.mxu0 0.0
        %524 = vmatpush2.msra.mxu0 0.0
        %525 = vmatprep.subr.mxu0 0.0
        %526 = vmatpush2.msra.mxu0 0.0
        %527 = vmatprep.mubr.f32.mxu0 0.0
        %528 = vmatmul.mubr.f32.gmra.mxu0 %v438
        %v529 = vpop.f32.mrf.mxu0
        %v530 = vadd.f32 0.0, %v529
        %v531 = vpop.f32.mrf.mxu0
        %532 = vmatprep.mubr.f32.mxu0 0.0
        %533 = vmatmul.mubr.f32.gmra.mxu0 %v439
        %v534 = vpop.f32.mrf.mxu0
        %v535 = vadd.f32 0.0, %v534
        %v536 = vpop.f32.mrf.mxu0
        %537 = vmatprep.mubr.f32.mxu0 0.0
        %538 = vmatmul.mubr.f32.gmra.mxu0 %v440
        %v539 = vpop.f32.mrf.mxu0
        %v540 = vadd.f32 0.0, %v539
        %v541 = vpop.f32.mrf.mxu0
        %542 = vmatprep.mubr.f32.mxu0 0.0
        %543 = vmatmul.mubr.f32.gmra.mxu0 %v441
        %v544 = vpop.f32.mrf.mxu0
        %v545 = vadd.f32 0.0, %v544
        %v546 = vpop.f32.mrf.mxu0
        %547 = vmatprep.mubr.f32.mxu0 0.0
        %548 = vmatmul.mubr.f32.gmra.mxu0 %v442
        %v549 = vpop.f32.mrf.mxu0
        %v550 = vadd.f32 0.0, %v549
        %v551 = vpop.f32.mrf.mxu0
        %552 = vmatprep.mubr.f32.mxu0 0.0
        %553 = vmatmul.mubr.f32.gmra.mxu0 %v443
        %v554 = vpop.f32.mrf.mxu0
        %v555 = vadd.f32 0.0, %v554
        %v556 = vpop.f32.mrf.mxu0
        %557 = vmatprep.mubr.f32.mxu0 0.0
        %558 = vmatmul.mubr.f32.gmra.mxu0 %v444
        %v559 = vpop.f32.mrf.mxu0
        %v560 = vadd.f32 0.0, %v559
        %v561 = vpop.f32.mrf.mxu0
        %562 = vmatprep.mubr.f32.mxu0 0.0
        %563 = vmatmul.mubr.f32.gmra.mxu0 %v445
        %v564 = vpop.f32.mrf.mxu0
        %v565 = vadd.f32 0.0, %v564
        %v566 = vpop.f32.mrf.mxu0
        %567 = vdwg.mxu0
        %v568 = vadd.f32 %v390, %v530
        %v569 = vadd.f32 %v391, %v535
        %v570 = vadd.f32 %v392, %v540
        %v571 = vadd.f32 %v393, %v545
        %v572 = vadd.f32 %v394, %v550
        %v573 = vadd.f32 %v395, %v555
        %v574 = vadd.f32 %v396, %v560
        %v575 = vadd.f32 %v397, %v565
        %576 = vset.pattern.permute.xlu0 2
        %577 = vperm.xlu0 %576, %v203
        %v578 = vpop.permute.xlu0 %577
        %579 = vset.pattern.permute.xlu0 2
        %580 = vperm.xlu0 %579, %v204
        %v581 = vpop.permute.xlu0 %580
        %582 = vset.pattern.permute.xlu0 2
        %583 = vperm.xlu0 %582, %v205
        %v584 = vpop.permute.xlu0 %583
        %585 = vset.pattern.permute.xlu0 2
        %586 = vperm.xlu0 %585, %v206
        %v587 = vpop.permute.xlu0 %586
        %588 = vset.pattern.permute.xlu0 2
        %589 = vperm.xlu0 %588, %v207
        %v590 = vpop.permute.xlu0 %589
        %591 = vset.pattern.permute.xlu0 2
        %592 = vperm.xlu0 %591, %v208
        %v593 = vpop.permute.xlu0 %592
        %594 = vset.pattern.permute.xlu0 2
        %595 = vperm.xlu0 %594, %v209
        %v596 = vpop.permute.xlu0 %595
        %597 = vset.pattern.permute.xlu0 2
        %598 = vperm.xlu0 %597, %v210
        %v599 = vpop.permute.xlu0 %598
        %vm600 = vcmp.eq.s32.totalorder %v212, %v578
        %vm601 = vcmp.eq.s32.totalorder %v212, %v581
        %vm602 = vcmp.eq.s32.totalorder %v212, %v584
        %vm603 = vcmp.eq.s32.totalorder %v212, %v587
        %vm604 = vcmp.eq.s32.totalorder %v212, %v590
        %vm605 = vcmp.eq.s32.totalorder %v212, %v593
        %vm606 = vcmp.eq.s32.totalorder %v212, %v596
        %vm607 = vcmp.eq.s32.totalorder %v212, %v599
        %v608 = vsel %vm600, 1, 0
        %v609 = vsel %vm601, 1, 0
        %v610 = vsel %vm602, 1, 0
        %v611 = vsel %vm603, 1, 0
        %v612 = vsel %vm604, 1, 0
        %v613 = vsel %vm605, 1, 0
        %v614 = vsel %vm606, 1, 0
        %v615 = vsel %vm607, 1, 0
        %v616 = vcvt.s32.f32 %v608
        %v617 = vcvt.s32.f32 %v609
        %v618 = vcvt.s32.f32 %v610
        %v619 = vcvt.s32.f32 %v611
        %v620 = vcvt.s32.f32 %v612
        %v621 = vcvt.s32.f32 %v613
        %v622 = vcvt.s32.f32 %v614
        %v623 = vcvt.s32.f32 %v615
        %s624 = scalar_lea.vmem [#allocation3], 256
        %v625 = vld [vmem:[%s624] sm:$0xff]
        %v626 = vld [vmem:[%s624 + $0x8] sm:$0xff]
        %v627 = vld [vmem:[%s624 + $0x10] sm:$0xff]
        %v628 = vld [vmem:[%s624 + $0x18] sm:$0xff]
        %v629 = vld [vmem:[%s624 + $0x20] sm:$0xff]
        %v630 = vld [vmem:[%s624 + $0x28] sm:$0xff]
        %v631 = vld [vmem:[%s624 + $0x30] sm:$0xff]
        %v632 = vld [vmem:[%s624 + $0x38] sm:$0xff]
        %v633 = vld [vmem:[%s624 + $0x40] sm:$0xff]
        %v634 = vld [vmem:[%s624 + $0x48] sm:$0xff]
        %v635 = vld [vmem:[%s624 + $0x50] sm:$0xff]
        %v636 = vld [vmem:[%s624 + $0x58] sm:$0xff]
        %v637 = vld [vmem:[%s624 + $0x60] sm:$0xff]
        %v638 = vld [vmem:[%s624 + $0x68] sm:$0xff]
        %v639 = vld [vmem:[%s624 + $0x70] sm:$0xff]
        %v640 = vld [vmem:[%s624 + $0x78] sm:$0xff]
        %641 = vmatprep.subr.mxu0 0.0
        %642 = vmatpush1.msra.mxu0 %v640
        %643 = vmatprep.subr.mxu0 0.0
        %644 = vmatpush1.msra.mxu0 %v639
        %645 = vmatprep.subr.mxu0 0.0
        %646 = vmatpush1.msra.mxu0 %v638
        %647 = vmatprep.subr.mxu0 0.0
        %648 = vmatpush1.msra.mxu0 %v637
        %649 = vmatprep.subr.mxu0 0.0
        %650 = vmatpush1.msra.mxu0 %v636
        %651 = vmatprep.subr.mxu0 0.0
        %652 = vmatpush1.msra.mxu0 %v635
        %653 = vmatprep.subr.mxu0 0.0
        %654 = vmatpush1.msra.mxu0 %v634
        %655 = vmatprep.subr.mxu0 0.0
        %656 = vmatpush1.msra.mxu0 %v633
        %657 = vmatprep.subr.mxu0 0.0
        %658 = vmatpush1.msra.mxu0 %v632
        %659 = vmatprep.subr.mxu0 0.0
        %660 = vmatpush1.msra.mxu0 %v631
        %661 = vmatprep.subr.mxu0 0.0
        %662 = vmatpush1.msra.mxu0 %v630
        %663 = vmatprep.subr.mxu0 0.0
        %664 = vmatpush1.msra.mxu0 %v629
        %665 = vmatprep.subr.mxu0 0.0
        %666 = vmatpush1.msra.mxu0 %v628
        %667 = vmatprep.subr.mxu0 0.0
        %668 = vmatpush1.msra.mxu0 %v627
        %669 = vmatprep.subr.mxu0 0.0
        %670 = vmatpush1.msra.mxu0 %v626
        %671 = vmatprep.subr.mxu0 0.0
        %672 = vmatpush1.msra.mxu0 %v625
        %673 = vmatprep.subr.mxu0 0.0
        %674 = vmatpush2.msra.mxu0 0.0
        %675 = vmatprep.subr.mxu0 0.0
        %676 = vmatpush2.msra.mxu0 0.0
        %677 = vmatprep.subr.mxu0 0.0
        %678 = vmatpush2.msra.mxu0 0.0
        %679 = vmatprep.subr.mxu0 0.0
        %680 = vmatpush2.msra.mxu0 0.0
        %681 = vmatprep.subr.mxu0 0.0
        %682 = vmatpush2.msra.mxu0 0.0
        %683 = vmatprep.subr.mxu0 0.0
        %684 = vmatpush2.msra.mxu0 0.0
        %685 = vmatprep.subr.mxu0 0.0
        %686 = vmatpush2.msra.mxu0 0.0
        %687 = vmatprep.subr.mxu0 0.0
        %688 = vmatpush2.msra.mxu0 0.0
        %689 = vmatprep.subr.mxu0 0.0
        %690 = vmatpush2.msra.mxu0 0.0
        %691 = vmatprep.subr.mxu0 0.0
        %692 = vmatpush2.msra.mxu0 0.0
        %693 = vmatprep.subr.mxu0 0.0
        %694 = vmatpush2.msra.mxu0 0.0
        %695 = vmatprep.subr.mxu0 0.0
        %696 = vmatpush2.msra.mxu0 0.0
        %697 = vmatprep.subr.mxu0 0.0
        %698 = vmatpush2.msra.mxu0 0.0
        %699 = vmatprep.subr.mxu0 0.0
        %700 = vmatpush2.msra.mxu0 0.0
        %701 = vmatprep.subr.mxu0 0.0
        %702 = vmatpush2.msra.mxu0 0.0
        %703 = vmatprep.subr.mxu0 0.0
        %704 = vmatpush2.msra.mxu0 0.0
        %705 = vmatprep.mubr.f32.mxu0 0.0
        %706 = vmatmul.mubr.f32.gmra.mxu0 %v616
        %v707 = vpop.f32.mrf.mxu0
        %v708 = vadd.f32 0.0, %v707
        %v709 = vpop.f32.mrf.mxu0
        %710 = vmatprep.mubr.f32.mxu0 0.0
        %711 = vmatmul.mubr.f32.gmra.mxu0 %v617
        %v712 = vpop.f32.mrf.mxu0
        %v713 = vadd.f32 0.0, %v712
        %v714 = vpop.f32.mrf.mxu0
        %715 = vmatprep.mubr.f32.mxu0 0.0
        %716 = vmatmul.mubr.f32.gmra.mxu0 %v618
        %v717 = vpop.f32.mrf.mxu0
        %v718 = vadd.f32 0.0, %v717
        %v719 = vpop.f32.mrf.mxu0
        %720 = vmatprep.mubr.f32.mxu0 0.0
        %721 = vmatmul.mubr.f32.gmra.mxu0 %v619
        %v722 = vpop.f32.mrf.mxu0
        %v723 = vadd.f32 0.0, %v722
        %v724 = vpop.f32.mrf.mxu0
        %725 = vmatprep.mubr.f32.mxu0 0.0
        %726 = vmatmul.mubr.f32.gmra.mxu0 %v620
        %v727 = vpop.f32.mrf.mxu0
        %v728 = vadd.f32 0.0, %v727
        %v729 = vpop.f32.mrf.mxu0
        %730 = vmatprep.mubr.f32.mxu0 0.0
        %731 = vmatmul.mubr.f32.gmra.mxu0 %v621
        %v732 = vpop.f32.mrf.mxu0
        %v733 = vadd.f32 0.0, %v732
        %v734 = vpop.f32.mrf.mxu0
        %735 = vmatprep.mubr.f32.mxu0 0.0
        %736 = vmatmul.mubr.f32.gmra.mxu0 %v622
        %v737 = vpop.f32.mrf.mxu0
        %v738 = vadd.f32 0.0, %v737
        %v739 = vpop.f32.mrf.mxu0
        %740 = vmatprep.mubr.f32.mxu0 0.0
        %741 = vmatmul.mubr.f32.gmra.mxu0 %v623
        %v742 = vpop.f32.mrf.mxu0
        %v743 = vadd.f32 0.0, %v742
        %v744 = vpop.f32.mrf.mxu0
        %745 = vdwg.mxu0
        %v746 = vadd.f32 %v568, %v708
        %v747 = vadd.f32 %v569, %v713
        %v748 = vadd.f32 %v570, %v718
        %v749 = vadd.f32 %v571, %v723
        %v750 = vadd.f32 %v572, %v728
        %v751 = vadd.f32 %v573, %v733
        %v752 = vadd.f32 %v574, %v738
        %v753 = vadd.f32 %v575, %v743
        %754 = vset.pattern.permute.xlu0 3
        %755 = vperm.xlu0 %754, %v203
        %v756 = vpop.permute.xlu0 %755
        %757 = vset.pattern.permute.xlu0 3
        %758 = vperm.xlu0 %757, %v204
        %v759 = vpop.permute.xlu0 %758
        %760 = vset.pattern.permute.xlu0 3
        %761 = vperm.xlu0 %760, %v205
        %v762 = vpop.permute.xlu0 %761
        %763 = vset.pattern.permute.xlu0 3
        %764 = vperm.xlu0 %763, %v206
        %v765 = vpop.permute.xlu0 %764
        %766 = vset.pattern.permute.xlu0 3
        %767 = vperm.xlu0 %766, %v207
        %v768 = vpop.permute.xlu0 %767
        %769 = vset.pattern.permute.xlu0 3
        %770 = vperm.xlu0 %769, %v208
        %v771 = vpop.permute.xlu0 %770
        %772 = vset.pattern.permute.xlu0 3
        %773 = vperm.xlu0 %772, %v209
        %v774 = vpop.permute.xlu0 %773
        %775 = vset.pattern.permute.xlu0 3
        %776 = vperm.xlu0 %775, %v210
        %v777 = vpop.permute.xlu0 %776
        %vm778 = vcmp.eq.s32.totalorder %v212, %v756
        %vm779 = vcmp.eq.s32.totalorder %v212, %v759
        %vm780 = vcmp.eq.s32.totalorder %v212, %v762
        %vm781 = vcmp.eq.s32.totalorder %v212, %v765
        %vm782 = vcmp.eq.s32.totalorder %v212, %v768
        %vm783 = vcmp.eq.s32.totalorder %v212, %v771
        %vm784 = vcmp.eq.s32.totalorder %v212, %v774
        %vm785 = vcmp.eq.s32.totalorder %v212, %v777
        %v786 = vsel %vm778, 1, 0
        %v787 = vsel %vm779, 1, 0
        %v788 = vsel %vm780, 1, 0
        %v789 = vsel %vm781, 1, 0
        %v790 = vsel %vm782, 1, 0
        %v791 = vsel %vm783, 1, 0
        %v792 = vsel %vm784, 1, 0
        %v793 = vsel %vm785, 1, 0
        %v794 = vcvt.s32.f32 %v786
        %v795 = vcvt.s32.f32 %v787
        %v796 = vcvt.s32.f32 %v788
        %v797 = vcvt.s32.f32 %v789
        %v798 = vcvt.s32.f32 %v790
        %v799 = vcvt.s32.f32 %v791
        %v800 = vcvt.s32.f32 %v792
        %v801 = vcvt.s32.f32 %v793
        %s802 = scalar_lea.vmem [#allocation3], 384
        %v803 = vld [vmem:[%s802] sm:$0xff]
        %v804 = vld [vmem:[%s802 + $0x8] sm:$0xff]
        %v805 = vld [vmem:[%s802 + $0x10] sm:$0xff]
        %v806 = vld [vmem:[%s802 + $0x18] sm:$0xff]
        %v807 = vld [vmem:[%s802 + $0x20] sm:$0xff]
        %v808 = vld [vmem:[%s802 + $0x28] sm:$0xff]
        %v809 = vld [vmem:[%s802 + $0x30] sm:$0xff]
        %v810 = vld [vmem:[%s802 + $0x38] sm:$0xff]
        %v811 = vld [vmem:[%s802 + $0x40] sm:$0xff]
        %v812 = vld [vmem:[%s802 + $0x48] sm:$0xff]
        %v813 = vld [vmem:[%s802 + $0x50] sm:$0xff]
        %v814 = vld [vmem:[%s802 + $0x58] sm:$0xff]
        %v815 = vld [vmem:[%s802 + $0x60] sm:$0xff]
        %v816 = vld [vmem:[%s802 + $0x68] sm:$0xff]
        %v817 = vld [vmem:[%s802 + $0x70] sm:$0xff]
        %v818 = vld [vmem:[%s802 + $0x78] sm:$0xff]
        %819 = vmatprep.subr.mxu0 0.0
        %820 = vmatpush1.msra.mxu0 %v818
        %821 = vmatprep.subr.mxu0 0.0
        %822 = vmatpush1.msra.mxu0 %v817
        %823 = vmatprep.subr.mxu0 0.0
        %824 = vmatpush1.msra.mxu0 %v816
        %825 = vmatprep.subr.mxu0 0.0
        %826 = vmatpush1.msra.mxu0 %v815
        %827 = vmatprep.subr.mxu0 0.0
        %828 = vmatpush1.msra.mxu0 %v814
        %829 = vmatprep.subr.mxu0 0.0
        %830 = vmatpush1.msra.mxu0 %v813
        %831 = vmatprep.subr.mxu0 0.0
        %832 = vmatpush1.msra.mxu0 %v812
        %833 = vmatprep.subr.mxu0 0.0
        %834 = vmatpush1.msra.mxu0 %v811
        %835 = vmatprep.subr.mxu0 0.0
        %836 = vmatpush1.msra.mxu0 %v810
        %837 = vmatprep.subr.mxu0 0.0
        %838 = vmatpush1.msra.mxu0 %v809
        %839 = vmatprep.subr.mxu0 0.0
        %840 = vmatpush1.msra.mxu0 %v808
        %841 = vmatprep.subr.mxu0 0.0
        %842 = vmatpush1.msra.mxu0 %v807
        %843 = vmatprep.subr.mxu0 0.0
        %844 = vmatpush1.msra.mxu0 %v806
        %845 = vmatprep.subr.mxu0 0.0
        %846 = vmatpush1.msra.mxu0 %v805
        %847 = vmatprep.subr.mxu0 0.0
        %848 = vmatpush1.msra.mxu0 %v804
        %849 = vmatprep.subr.mxu0 0.0
        %850 = vmatpush1.msra.mxu0 %v803
        %851 = vmatprep.subr.mxu0 0.0
        %852 = vmatpush2.msra.mxu0 0.0
        %853 = vmatprep.subr.mxu0 0.0
        %854 = vmatpush2.msra.mxu0 0.0
        %855 = vmatprep.subr.mxu0 0.0
        %856 = vmatpush2.msra.mxu0 0.0
        %857 = vmatprep.subr.mxu0 0.0
        %858 = vmatpush2.msra.mxu0 0.0
        %859 = vmatprep.subr.mxu0 0.0
        %860 = vmatpush2.msra.mxu0 0.0
        %861 = vmatprep.subr.mxu0 0.0
        %862 = vmatpush2.msra.mxu0 0.0
        %863 = vmatprep.subr.mxu0 0.0
        %864 = vmatpush2.msra.mxu0 0.0
        %865 = vmatprep.subr.mxu0 0.0
        %866 = vmatpush2.msra.mxu0 0.0
        %867 = vmatprep.subr.mxu0 0.0
        %868 = vmatpush2.msra.mxu0 0.0
        %869 = vmatprep.subr.mxu0 0.0
        %870 = vmatpush2.msra.mxu0 0.0
        %871 = vmatprep.subr.mxu0 0.0
        %872 = vmatpush2.msra.mxu0 0.0
        %873 = vmatprep.subr.mxu0 0.0
        %874 = vmatpush2.msra.mxu0 0.0
        %875 = vmatprep.subr.mxu0 0.0
        %876 = vmatpush2.msra.mxu0 0.0
        %877 = vmatprep.subr.mxu0 0.0
        %878 = vmatpush2.msra.mxu0 0.0
        %879 = vmatprep.subr.mxu0 0.0
        %880 = vmatpush2.msra.mxu0 0.0
        %881 = vmatprep.subr.mxu0 0.0
        %882 = vmatpush2.msra.mxu0 0.0
        %883 = vmatprep.mubr.f32.mxu0 0.0
        %884 = vmatmul.mubr.f32.gmra.mxu0 %v794
        %v885 = vpop.f32.mrf.mxu0
        %v886 = vadd.f32 0.0, %v885
        %v887 = vpop.f32.mrf.mxu0
        %888 = vmatprep.mubr.f32.mxu0 0.0
        %889 = vmatmul.mubr.f32.gmra.mxu0 %v795
        %v890 = vpop.f32.mrf.mxu0
        %v891 = vadd.f32 0.0, %v890
        %v892 = vpop.f32.mrf.mxu0
        %893 = vmatprep.mubr.f32.mxu0 0.0
        %894 = vmatmul.mubr.f32.gmra.mxu0 %v796
        %v895 = vpop.f32.mrf.mxu0
        %v896 = vadd.f32 0.0, %v895
        %v897 = vpop.f32.mrf.mxu0
        %898 = vmatprep.mubr.f32.mxu0 0.0
        %899 = vmatmul.mubr.f32.gmra.mxu0 %v797
        %v900 = vpop.f32.mrf.mxu0
        %v901 = vadd.f32 0.0, %v900
        %v902 = vpop.f32.mrf.mxu0
        %903 = vmatprep.mubr.f32.mxu0 0.0
        %904 = vmatmul.mubr.f32.gmra.mxu0 %v798
        %v905 = vpop.f32.mrf.mxu0
        %v906 = vadd.f32 0.0, %v905
        %v907 = vpop.f32.mrf.mxu0
        %908 = vmatprep.mubr.f32.mxu0 0.0
        %909 = vmatmul.mubr.f32.gmra.mxu0 %v799
        %v910 = vpop.f32.mrf.mxu0
        %v911 = vadd.f32 0.0, %v910
        %v912 = vpop.f32.mrf.mxu0
        %913 = vmatprep.mubr.f32.mxu0 0.0
        %914 = vmatmul.mubr.f32.gmra.mxu0 %v800
        %v915 = vpop.f32.mrf.mxu0
        %v916 = vadd.f32 0.0, %v915
        %v917 = vpop.f32.mrf.mxu0
        %918 = vmatprep.mubr.f32.mxu0 0.0
        %919 = vmatmul.mubr.f32.gmra.mxu0 %v801
        %v920 = vpop.f32.mrf.mxu0
        %v921 = vadd.f32 0.0, %v920
        %v922 = vpop.f32.mrf.mxu0
        %923 = vdwg.mxu0
        %v924 = vadd.f32 %v746, %v886
        %v925 = vadd.f32 %v747, %v891
        %v926 = vadd.f32 %v748, %v896
        %v927 = vadd.f32 %v749, %v901
        %v928 = vadd.f32 %v750, %v906
        %v929 = vadd.f32 %v751, %v911
        %v930 = vadd.f32 %v752, %v916
        %v931 = vadd.f32 %v753, %v921
        %932 = vst [vmem:[#allocation2] sm:$0xff] %v924
        %933 = vst [vmem:[#allocation2 + $0x8] sm:$0xff] %v925
        %934 = vst [vmem:[#allocation2 + $0x10] sm:$0xff] %v926
        %935 = vst [vmem:[#allocation2 + $0x18] sm:$0xff] %v927
        %936 = vst [vmem:[#allocation2 + $0x20] sm:$0xff] %v928
        %937 = vst [vmem:[#allocation2 + $0x28] sm:$0xff] %v929
        %938 = vst [vmem:[#allocation2 + $0x30] sm:$0xff] %v930
        %939 = vst [vmem:[#allocation2 + $0x38] sm:$0xff] %v931
        // Predicated region
        $region37: #{tpu_custom_call.1} parent=27 // pred_check
          %p940 = pneg %p181
        $region38: #{tpu_custom_call.1} parent=27 // pred_check_branch
          %942 = sbr.rel (%p940) target = $region40
        $region39: #{tpu_custom_call.1} parent=27 // pred_region
          %v943 = vld [vmem:[#allocation2] sm:$0xff]
          %v944 = vld [vmem:[#allocation2 + $0x8] sm:$0xff]
          %v945 = vld [vmem:[#allocation2 + $0x10] sm:$0xff]
          %v946 = vld [vmem:[#allocation2 + $0x18] sm:$0xff]
          %v947 = vld [vmem:[#allocation2 + $0x20] sm:$0xff]
          %v948 = vld [vmem:[#allocation2 + $0x28] sm:$0xff]
          %v949 = vld [vmem:[#allocation2 + $0x30] sm:$0xff]
          %v950 = vld [vmem:[#allocation2 + $0x38] sm:$0xff]
          %951 = vst [vmem:[%s172] sm:$0xff] %v943
          %952 = vst [vmem:[%s172 + $0x8] sm:$0xff] %v944
          %953 = vst [vmem:[%s172 + $0x10] sm:$0xff] %v945
          %954 = vst [vmem:[%s172 + $0x18] sm:$0xff] %v946
          %955 = vst [vmem:[%s172 + $0x20] sm:$0xff] %v947
          %956 = vst [vmem:[%s172 + $0x28] sm:$0xff] %v948
          %957 = vst [vmem:[%s172 + $0x30] sm:$0xff] %v949
          %958 = vst [vmem:[%s172 + $0x38] sm:$0xff] %v950
        $region40: #{tpu_custom_call.1} parent=27 // pred_fallthru
          _
        %s959 = sand.u32 %s89, 1
        %s960 = scalar_lea.sflag [#allocation5], %s959
        %s961 = sand.u32 %s89, 1
        %s962 = smul.addr %s961, 64
        %s963 = scalar_lea.vmem [#allocation6], %s962
        // Predicated region
        $region41: #{tpu_custom_call.1} parent=27 // pred_check
          %p964 = pneg %p99
        $region42: #{tpu_custom_call.1} parent=27 // pred_check_branch
          %966 = sbr.rel (%p964) target = $region44
        $region43: #{tpu_custom_call.1} parent=27 // pred_region
          %s967 = smul.u32 8, %s21
          %s969 = ssub.s32 1024, 1024
          %970 = vsyncadd %s960, %s969
          %s971 = smul.addr %s967, 128
          %s972 = scalar_lea.hbm %s2, %s971
          %s973 = sshll.u32 %s963, 4
          %s974 = int_to_ptr.vmem [resolvable:$true] %s973
          %979 = dma.vmem_to_hbm [thread:$0]  %s974, 1024, %s972, %s960, 128, 128, 8
        $region44: #{tpu_custom_call.1} parent=27 // pred_fallthru
          _
      $region28: #{tpu_custom_call.1} parent=5 // pred_fallthru
        _
      %p980 = scmp.le.s32.totalorder 2, %s12
      // Predicated region
      $region45: #{tpu_custom_call.1} parent=5 // pred_check
        %p981 = pneg %p980
      $region46: #{tpu_custom_call.1} parent=5 // pred_check_branch
        %983 = sbr.rel (%p981) target = $region48
      $region47: #{tpu_custom_call.1} parent=5 // pred_region
        %s984 = ssub.s32 %s12, 2
        // Predicated region
        $region49: #{tpu_custom_call.1} parent=47 // pred_check
          %p985 = pneg %p105
        $region50: #{tpu_custom_call.1} parent=47 // pred_check_branch
          %987 = sbr.rel (%p985) target = $region52
        $region51: #{tpu_custom_call.1} parent=47 // pred_region
          %s988 = sand.u32 %s90, 1
          %s989 = scalar_lea.sflag [#allocation5], %s988
          %s990 = sand.u32 %s90, 1
          %s991 = smul.addr %s990, 64
          %s992 = scalar_lea.vmem [#allocation6], %s991
          %993 = dma.done %s989, 1024
        $region52: #{tpu_custom_call.1} parent=47 // pred_fallthru
          _
      $region48: #{tpu_custom_call.1} parent=5 // pred_fallthru
        _
    $region6: #{tpu_custom_call.1} parent=1 // loop_footer
      %s16 = sadd.s32 1, %s12
    $region7: #{tpu_custom_call.1} parent=1 // loop_footer_branch
      %11 = sbr.rel target = $region3
    $region8: #{tpu_custom_call.1} parent=1 // loop_exit
      _
    %994 = vsyncpa [#allocation4], 1
    %s995 = scalar_lea.sflag [#allocation4], 1
    %996 = vsyncpa %s995, 1
    %997 = vsyncpa [#allocation5], 1
    %s998 = scalar_lea.sflag [#allocation5], 1
    %999 = vsyncpa %s998, 1

// kernel: tpu_custom_call.1
$region0: #{tpu_custom_call.1}
  #allocation0 [shape = 'u32[]', space=smem, size = 0x4, offset = 0x4, fixed_abs, tag = 'smem constant byte address 0x4 - core index']
  #allocation1 [shape = 'u32[144,128]{1,0:T(1,128)}', space=vmem, size = 0x12000, scoped, tag = 'internal scratch']
  #allocation2 [shape = 'f32[64,128]{1,0:T(8,128)}', space=vmem, size = 0x8000, scoped, tag = 'scratch operand']
  %s0 = inlined_call_operand.vmem [shape: s32[128,4], index: 0, kind: input, shape index: {}]
  %s1 = inlined_call_operand.hbm [shape: f32[4,128,128], index: 1, kind: input, shape index: {}]
  %s2 = inlined_call_operand.hbm [shape: f32[128,128], index: 2, kind: output, shape index: {}]
  %s3 = sld [smem:[#allocation0]]
  $region53: #{tpu_custom_call.1} parent=0
    _
  %s5 = ssub.s32 1, %s3
  %s6 = scalar_select 0, %s5, %s3
  $region1: #{tpu_custom_call.1} parent=0
    #allocation3 [shape = 'u8[262144]{0}', space=vmem, size = 0x40000, scoped, tag = 'input window, operand 1, single buffered']
    #allocation4 [shape = 's32[2]{0}', space=sflag, size = 0x8, scoped, tag = 'scoped memory for tpu_custom_call.1']
    #allocation5 [shape = 's32[2]{0}', space=sflag, size = 0x8, scoped, tag = 'scoped memory for tpu_custom_call.1']
    #allocation6 [shape = 'u8[65536]{0}', space=vmem, size = 0x10000, scoped, tag = 'output window, operand 0']
    %7 = vsyncpa [#allocation4], 0
    %8 = vsyncpa [#allocation5], 0
    %s9 = scalar_lea.sflag [#allocation5], 1
    %10 = vsyncpa %s9, 0
    loop: start=0, step=1, limit=4
    $region2: #{tpu_custom_call.1} parent=1 // loop_pre_header
      _
    $region3: #{tpu_custom_call.1} parent=1 // loop_header
      %s12 = sphi 0, %s16
      %p13 = scmp.ge.s32.totalorder %s12, 4
      %s19 = sphi 0, %s31
      %s20 = sphi 0, %s27
      %s21 = sphi 0, %s19
      %s22 = sphi 0, %s20
      %s23 = sphi 0, %s21
      %s24 = sphi 0, %s22
      %s34 = sphi 0, %s36
      %s37 = sphi 0, %s34
      %s38 = sphi 0, %s37
      %s54 = sphi 0, %s38
      %s60 = sphi 0, %s62
      %s63 = sphi 0, %s60
      %s64 = sphi 0, %s63
      %s80 = sphi 0, %s64
      %s86 = sphi 0, %s88
      %s89 = sphi 0, %s86
      %s90 = sphi 0, %s89
      %s106 = sphi 0, %s90
    $region4: #{tpu_custom_call.1} parent=1 // loop_header_branch
      %15 = sbr.rel (%p13) target = $region8
    $region5: #{tpu_custom_call.1} parent=1 // loop_body
      %s17 = ssub.s32 %s12, 1
      %s18 = ssub.s32 %s12, 2
      %s25 = sadd.s32 1, %s20
      %p26 = scmp.ge.s32.totalorder %s25, 1
      %s27 = scalar_select %p26, 0, %s25
      %s28 = sadd.s32 1, %s19
      %s29 = scalar_select %p26, %s28, %s19
      %p30 = scmp.ge.s32.totalorder %s29, 2
      %s31 = scalar_select %p30, 0, %s29
      %s32 = ssub.s32 %s19, %s31
      %p33 = scmp.eq.s32.totalorder %s32, 0
      %s35 = sadd.s32 %s34, 1
      %s36 = scalar_select %p33, %s34, %s35
      %p39 = pneg %p33
      %p40 = scmp.eq.s32.totalorder %s12, 1
      %p41 = por %p39, %p40
      %p42 = scmp.ne.s32.totalorder %s34, %s37
      %p43 = scmp.eq.s32.totalorder %s12, 0
      %p44 = por %p42, %p43
      %p45 = scmp.ne.s32.totalorder %s34, %s37
      %p46 = scmp.eq.s32.totalorder %s17, 1
      %p47 = por %p45, %p46
      %p48 = scmp.ne.s32.totalorder %s37, %s38
      %p49 = scmp.eq.s32.totalorder %s17, 0
      %p50 = por %p48, %p49
      %p51 = scmp.ne.s32.totalorder %s37, %s38
      %p52 = scmp.eq.s32.totalorder %s18, 1
      %p53 = por %p51, %p52
      %p55 = scmp.ne.s32.totalorder %s38, %s54
      %p56 = scmp.eq.s32.totalorder %s18, 0
      %p57 = por %p55, %p56
      %s58 = ssub.s32 %s20, %s27
      %p59 = scmp.eq.s32.totalorder %s58, 0
      %s61 = sadd.s32 %s60, 1
      %s62 = scalar_select %p59, %s60, %s61
      %p65 = pneg %p59
      %p66 = scmp.eq.s32.totalorder %s12, 1
      %p67 = por %p65, %p66
      %p68 = scmp.ne.s32.totalorder %s60, %s63
      %p69 = scmp.eq.s32.totalorder %s12, 0
      %p70 = por %p68, %p69
      %p71 = scmp.ne.s32.totalorder %s60, %s63
      %p72 = scmp.eq.s32.totalorder %s17, 1
      %p73 = por %p71, %p72
      %p74 = scmp.ne.s32.totalorder %s63, %s64
      %p75 = scmp.eq.s32.totalorder %s17, 0
      %p76 = por %p74, %p75
      %p77 = scmp.ne.s32.totalorder %s63, %s64
      %p78 = scmp.eq.s32.totalorder %s18, 1
      %p79 = por %p77, %p78
      %p81 = scmp.ne.s32.totalorder %s64, %s80
      %p82 = scmp.eq.s32.totalorder %s18, 0
      %p83 = por %p81, %p82
      %s84 = ssub.s32 %s19, %s31
      %p85 = scmp.eq.s32.totalorder %s84, 0
      %s87 = sadd.s32 %s86, 1
      %s88 = scalar_select %p85, %s86, %s87
      %p91 = pneg %p85
      %p92 = scmp.eq.s32.totalorder %s12, 1
      %p93 = por %p91, %p92
      %p94 = scmp.ne.s32.totalorder %s86, %s89
      %p95 = scmp.eq.s32.totalorder %s12, 0
      %p96 = por %p94, %p95
      %p97 = scmp.ne.s32.totalorder %s86, %s89
      %p98 = scmp.eq.s32.totalorder %s17, 1
      %p99 = por %p97, %p98
      %p100 = scmp.ne.s32.totalorder %s89, %s90
      %p101 = scmp.eq.s32.totalorder %s17, 0
      %p102 = por %p100, %p101
      %p103 = scmp.ne.s32.totalorder %s89, %s90
      %p104 = scmp.eq.s32.totalorder %s18, 1
      %p105 = por %p103, %p104
      %p107 = scmp.ne.s32.totalorder %s90, %s106
      %p108 = scmp.eq.s32.totalorder %s18, 0
      %p109 = por %p107, %p108
      %p110 = scmp.le.s32.totalorder 1, %s12
      %p111 = scmp.lt.s32.totalorder %s12, 3
      %p112 = pnand %p110, %p111
      %p113 = pneg %p112
      // Predicated region
      $region9: #{tpu_custom_call.1} parent=5 // pred_check
        _
      $region10: #{tpu_custom_call.1} parent=5 // pred_check_branch
        %115 = sbr.rel (%p112) target = $region12
      $region11: #{tpu_custom_call.1} parent=5 // pred_region
        %s116 = ssub.s32 %s12, 1
        // Predicated region
        $region13: #{tpu_custom_call.1} parent=11 // pred_check
          %p117 = pneg %p76
        $region14: #{tpu_custom_call.1} parent=11 // pred_check_branch
          %119 = sbr.rel (%p117) target = $region16
        $region15: #{tpu_custom_call.1} parent=11 // pred_region
          %s120 = smul.u32 16, %s22
          %s122 = ssub.s32 8192, 8192
          %123 = vsyncadd [#allocation4], %s122
          %s124 = smul.addr %s120, 128
          %s125 = scalar_lea.hbm %s1, %s124
          %s126 = sshll.u32 [#allocation3], 4
          %s127 = int_to_ptr.vmem [resolvable:$true] %s126
          %132 = dma.hbm_to_vmem [thread:$0]  %s125, 8192, %s127, [#allocation4], 128, 128, 8
        $region16: #{tpu_custom_call.1} parent=11 // pred_fallthru
          _
      $region12: #{tpu_custom_call.1} parent=5 // pred_fallthru
        _
      %p133 = scmp.lt.s32.totalorder %s12, 2
      // Predicated region
      $region17: #{tpu_custom_call.1} parent=5 // pred_check
        %p134 = pneg %p133
      $region18: #{tpu_custom_call.1} parent=5 // pred_check_branch
        %136 = sbr.rel (%p134) target = $region20
      $region19: #{tpu_custom_call.1} parent=5 // pred_region
        // Predicated region
        $region21: #{tpu_custom_call.1} parent=19 // pred_check
          %p137 = pneg %p44
        $region22: #{tpu_custom_call.1} parent=19 // pred_check_branch
          %139 = sbr.rel (%p137) target = $region24
        $region23: #{tpu_custom_call.1} parent=19 // pred_region
          %s140 = smul.u32 8, %s19
          %p141 = scmp.lt.s32.totalorder %s140, 15
          %s142 = scalar_select %p141, %s140, 15
          %s143 = smul.addr %s142, 8
          %s144 = scalar_lea.vmem %s0, %s143
          %s145 = smul.u32 8, %s19
        $region24: #{tpu_custom_call.1} parent=19 // pred_fallthru
          _
      $region20: #{tpu_custom_call.1} parent=5 // pred_fallthru
        _
      %p146 = scmp.le.s32.totalorder 1, %s12
      %p147 = scmp.lt.s32.totalorder %s12, 3
      %p148 = pnand %p146, %p147
      %p149 = pneg %p148
      // Predicated region
      $region25: #{tpu_custom_call.1} parent=5 // pred_check
        _
      $region26: #{tpu_custom_call.1} parent=5 // pred_check_branch
        %151 = sbr.rel (%p148) target = $region28
      $region27: #{tpu_custom_call.1} parent=5 // pred_region
        %s152 = ssub.s32 %s12, 1
        // Predicated region
        $region29: #{tpu_custom_call.1} parent=27 // pred_check
          %p153 = pneg %p76
        $region30: #{tpu_custom_call.1} parent=27 // pred_check_branch
          %155 = sbr.rel (%p153) target = $region32
        $region31: #{tpu_custom_call.1} parent=27 // pred_region
          %156 = dma.done [#allocation4], 8192
        $region32: #{tpu_custom_call.1} parent=27 // pred_fallthru
          _
        %s157 = smul.u32 8, %s21
        %p158 = scmp.lt.s32.totalorder %s157, 15
        %s159 = scalar_select %p158, %s157, 15
        %s160 = smul.addr %s159, 8
        %s161 = scalar_lea.vmem %s0, %s160
        %p162 = pneg %p50
        %p163 = pneg %p47
        %p164 = pneg %p76
        %p165 = pneg %p73
        %p166 = pneg %p102
        %p167 = pneg %p99
        %s168 = sand.u32 %s89, 1
        %s169 = scalar_lea.sflag [#allocation5], %s168
        %s170 = sand.u32 %s89, 1
        %s171 = smul.addr %s170, 64
        %s172 = scalar_lea.vmem [#allocation6], %s171
        %s173 = smul.u32 8, %s21
        %p174 = scmp.lt.s32.totalorder %s173, 15
        %s175 = scalar_select %p174, %s173, 15
        %s176 = smul.addr %s175, 8
        %s177 = scalar_lea.vmem %s0, %s176
        %s178 = smul.u32 8, %s21
        %s179 = smul.u32 16, %s22
        %s180 = smul.u32 8, %s21
        %p181 = scmp.eq.s32.totalorder %s22, 0
        // Predicated region
        $region33: #{tpu_custom_call.1} parent=27 // pred_check
          %p182 = pneg %p181
        $region34: #{tpu_custom_call.1} parent=27 // pred_check_branch
          %184 = sbr.rel (%p182) target = $region36
        $region35: #{tpu_custom_call.1} parent=27 // pred_region
          %185 = vst [vmem:[#allocation2] sm:$0xff] 0.0
          %186 = vst [vmem:[#allocation2 + $0x8] sm:$0xff] 0.0
          %187 = vst [vmem:[#allocation2 + $0x10] sm:$0xff] 0.0
          %188 = vst [vmem:[#allocation2 + $0x18] sm:$0xff] 0.0
          %189 = vst [vmem:[#allocation2 + $0x20] sm:$0xff] 0.0
          %190 = vst [vmem:[#allocation2 + $0x28] sm:$0xff] 0.0
          %191 = vst [vmem:[#allocation2 + $0x30] sm:$0xff] 0.0
          %192 = vst [vmem:[#allocation2 + $0x38] sm:$0xff] 0.0
        $region36: #{tpu_custom_call.1} parent=27 // pred_fallthru
          _
        %v193 = vld [vmem:[%s177] sm:$0xff]
        %v194 = vld [vmem:[%s177 + $0x8] sm:$0xff]
        %v195 = vld [vmem:[%s177 + $0x10] sm:$0xff]
        %v196 = vld [vmem:[%s177 + $0x18] sm:$0xff]
        %v197 = vld [vmem:[%s177 + $0x20] sm:$0xff]
        %v198 = vld [vmem:[%s177 + $0x28] sm:$0xff]
        %v199 = vld [vmem:[%s177 + $0x30] sm:$0xff]
        %v200 = vld [vmem:[%s177 + $0x38] sm:$0xff]
        %s201 = smul.u32 %s22, 128
        %v202 = vstv %s201
        %v203 = vsub.s32 %v193, %v202
        %v204 = vsub.s32 %v194, %v202
        %v205 = vsub.s32 %v195, %v202
        %v206 = vsub.s32 %v196, %v202
        %v207 = vsub.s32 %v197, %v202
        %v208 = vsub.s32 %v198, %v202
        %v209 = vsub.s32 %v199, %v202
        %v210 = vsub.s32 %v200, %v202
        %v211 = vlaneseq
        %v212 = vand.u32 %v211, 127
        %v213 = vld [vmem:[#allocation2] sm:$0xff]
        %v214 = vld [vmem:[#allocation2 + $0x8] sm:$0xff]
        %v215 = vld [vmem:[#allocation2 + $0x10] sm:$0xff]
        %v216 = vld [vmem:[#allocation2 + $0x18] sm:$0xff]
        %v217 = vld [vmem:[#allocation2 + $0x20] sm:$0xff]
        %v218 = vld [vmem:[#allocation2 + $0x28] sm:$0xff]
        %v219 = vld [vmem:[#allocation2 + $0x30] sm:$0xff]
        %v220 = vld [vmem:[#allocation2 + $0x38] sm:$0xff]
        %221 = vset.pattern.permute.xlu0 0
        %222 = vperm.xlu0 %221, %v203
        %v223 = vpop.permute.xlu0 %222
        %224 = vset.pattern.permute.xlu0 0
        %225 = vperm.xlu0 %224, %v204
        %v226 = vpop.permute.xlu0 %225
        %227 = vset.pattern.permute.xlu0 0
        %228 = vperm.xlu0 %227, %v205
        %v229 = vpop.permute.xlu0 %228
        %230 = vset.pattern.permute.xlu0 0
        %231 = vperm.xlu0 %230, %v206
        %v232 = vpop.permute.xlu0 %231
        %233 = vset.pattern.permute.xlu0 0
        %234 = vperm.xlu0 %233, %v207
        %v235 = vpop.permute.xlu0 %234
        %236 = vset.pattern.permute.xlu0 0
        %237 = vperm.xlu0 %236, %v208
        %v238 = vpop.permute.xlu0 %237
        %239 = vset.pattern.permute.xlu0 0
        %240 = vperm.xlu0 %239, %v209
        %v241 = vpop.permute.xlu0 %240
        %242 = vset.pattern.permute.xlu0 0
        %243 = vperm.xlu0 %242, %v210
        %v244 = vpop.permute.xlu0 %243
        %vm245 = vcmp.eq.s32.totalorder %v212, %v223
        %vm246 = vcmp.eq.s32.totalorder %v212, %v226
        %vm247 = vcmp.eq.s32.totalorder %v212, %v229
        %vm248 = vcmp.eq.s32.totalorder %v212, %v232
        %vm249 = vcmp.eq.s32.totalorder %v212, %v235
        %vm250 = vcmp.eq.s32.totalorder %v212, %v238
        %vm251 = vcmp.eq.s32.totalorder %v212, %v241
        %vm252 = vcmp.eq.s32.totalorder %v212, %v244
        %v253 = vsel %vm245, 1, 0
        %v254 = vsel %vm246, 1, 0
        %v255 = vsel %vm247, 1, 0
        %v256 = vsel %vm248, 1, 0
        %v257 = vsel %vm249, 1, 0
        %v258 = vsel %vm250, 1, 0
        %v259 = vsel %vm251, 1, 0
        %v260 = vsel %vm252, 1, 0
        %v261 = vcvt.s32.f32 %v253
        %v262 = vcvt.s32.f32 %v254
        %v263 = vcvt.s32.f32 %v255
        %v264 = vcvt.s32.f32 %v256
        %v265 = vcvt.s32.f32 %v257
        %v266 = vcvt.s32.f32 %v258
        %v267 = vcvt.s32.f32 %v259
        %v268 = vcvt.s32.f32 %v260
        %v269 = vld [vmem:[#allocation3] sm:$0xff]
        %v270 = vld [vmem:[#allocation3 + $0x8] sm:$0xff]
        %v271 = vld [vmem:[#allocation3 + $0x10] sm:$0xff]
        %v272 = vld [vmem:[#allocation3 + $0x18] sm:$0xff]
        %v273 = vld [vmem:[#allocation3 + $0x20] sm:$0xff]
        %v274 = vld [vmem:[#allocation3 + $0x28] sm:$0xff]
        %v275 = vld [vmem:[#allocation3 + $0x30] sm:$0xff]
        %v276 = vld [vmem:[#allocation3 + $0x38] sm:$0xff]
        %v277 = vld [vmem:[#allocation3 + $0x40] sm:$0xff]
        %v278 = vld [vmem:[#allocation3 + $0x48] sm:$0xff]
        %v279 = vld [vmem:[#allocation3 + $0x50] sm:$0xff]
        %v280 = vld [vmem:[#allocation3 + $0x58] sm:$0xff]
        %v281 = vld [vmem:[#allocation3 + $0x60] sm:$0xff]
        %v282 = vld [vmem:[#allocation3 + $0x68] sm:$0xff]
        %v283 = vld [vmem:[#allocation3 + $0x70] sm:$0xff]
        %v284 = vld [vmem:[#allocation3 + $0x78] sm:$0xff]
        %285 = vmatprep.subr.mxu0 0.0
        %286 = vmatpush1.msra.mxu0 %v284
        %287 = vmatprep.subr.mxu0 0.0
        %288 = vmatpush1.msra.mxu0 %v283
        %289 = vmatprep.subr.mxu0 0.0
        %290 = vmatpush1.msra.mxu0 %v282
        %291 = vmatprep.subr.mxu0 0.0
        %292 = vmatpush1.msra.mxu0 %v281
        %293 = vmatprep.subr.mxu0 0.0
        %294 = vmatpush1.msra.mxu0 %v280
        %295 = vmatprep.subr.mxu0 0.0
        %296 = vmatpush1.msra.mxu0 %v279
        %297 = vmatprep.subr.mxu0 0.0
        %298 = vmatpush1.msra.mxu0 %v278
        %299 = vmatprep.subr.mxu0 0.0
        %300 = vmatpush1.msra.mxu0 %v277
        %301 = vmatprep.subr.mxu0 0.0
        %302 = vmatpush1.msra.mxu0 %v276
        %303 = vmatprep.subr.mxu0 0.0
        %304 = vmatpush1.msra.mxu0 %v275
        %305 = vmatprep.subr.mxu0 0.0
        %306 = vmatpush1.msra.mxu0 %v274
        %307 = vmatprep.subr.mxu0 0.0
        %308 = vmatpush1.msra.mxu0 %v273
        %309 = vmatprep.subr.mxu0 0.0
        %310 = vmatpush1.msra.mxu0 %v272
        %311 = vmatprep.subr.mxu0 0.0
        %312 = vmatpush1.msra.mxu0 %v271
        %313 = vmatprep.subr.mxu0 0.0
        %314 = vmatpush1.msra.mxu0 %v270
        %315 = vmatprep.subr.mxu0 0.0
        %316 = vmatpush1.msra.mxu0 %v269
        %317 = vmatprep.subr.mxu0 0.0
        %318 = vmatpush2.msra.mxu0 0.0
        %319 = vmatprep.subr.mxu0 0.0
        %320 = vmatpush2.msra.mxu0 0.0
        %321 = vmatprep.subr.mxu0 0.0
        %322 = vmatpush2.msra.mxu0 0.0
        %323 = vmatprep.subr.mxu0 0.0
        %324 = vmatpush2.msra.mxu0 0.0
        %325 = vmatprep.subr.mxu0 0.0
        %326 = vmatpush2.msra.mxu0 0.0
        %327 = vmatprep.subr.mxu0 0.0
        %328 = vmatpush2.msra.mxu0 0.0
        %329 = vmatprep.subr.mxu0 0.0
        %330 = vmatpush2.msra.mxu0 0.0
        %331 = vmatprep.subr.mxu0 0.0
        %332 = vmatpush2.msra.mxu0 0.0
        %333 = vmatprep.subr.mxu0 0.0
        %334 = vmatpush2.msra.mxu0 0.0
        %335 = vmatprep.subr.mxu0 0.0
        %336 = vmatpush2.msra.mxu0 0.0
        %337 = vmatprep.subr.mxu0 0.0
        %338 = vmatpush2.msra.mxu0 0.0
        %339 = vmatprep.subr.mxu0 0.0
        %340 = vmatpush2.msra.mxu0 0.0
        %341 = vmatprep.subr.mxu0 0.0
        %342 = vmatpush2.msra.mxu0 0.0
        %343 = vmatprep.subr.mxu0 0.0
        %344 = vmatpush2.msra.mxu0 0.0
        %345 = vmatprep.subr.mxu0 0.0
        %346 = vmatpush2.msra.mxu0 0.0
        %347 = vmatprep.subr.mxu0 0.0
        %348 = vmatpush2.msra.mxu0 0.0
        %349 = vmatprep.mubr.f32.mxu0 0.0
        %350 = vmatmul.mubr.f32.gmra.mxu0 %v261
        %v351 = vpop.f32.mrf.mxu0
        %v352 = vadd.f32 0.0, %v351
        %v353 = vpop.f32.mrf.mxu0
        %354 = vmatprep.mubr.f32.mxu0 0.0
        %355 = vmatmul.mubr.f32.gmra.mxu0 %v262
        %v356 = vpop.f32.mrf.mxu0
        %v357 = vadd.f32 0.0, %v356
        %v358 = vpop.f32.mrf.mxu0
        %359 = vmatprep.mubr.f32.mxu0 0.0
        %360 = vmatmul.mubr.f32.gmra.mxu0 %v263
        %v361 = vpop.f32.mrf.mxu0
        %v362 = vadd.f32 0.0, %v361
        %v363 = vpop.f32.mrf.mxu0
        %364 = vmatprep.mubr.f32.mxu0 0.0
        %365 = vmatmul.mubr.f32.gmra.mxu0 %v264
        %v366 = vpop.f32.mrf.mxu0
        %v367 = vadd.f32 0.0, %v366
        %v368 = vpop.f32.mrf.mxu0
        %369 = vmatprep.mubr.f32.mxu0 0.0
        %370 = vmatmul.mubr.f32.gmra.mxu0 %v265
        %v371 = vpop.f32.mrf.mxu0
        %v372 = vadd.f32 0.0, %v371
        %v373 = vpop.f32.mrf.mxu0
        %374 = vmatprep.mubr.f32.mxu0 0.0
        %375 = vmatmul.mubr.f32.gmra.mxu0 %v266
        %v376 = vpop.f32.mrf.mxu0
        %v377 = vadd.f32 0.0, %v376
        %v378 = vpop.f32.mrf.mxu0
        %379 = vmatprep.mubr.f32.mxu0 0.0
        %380 = vmatmul.mubr.f32.gmra.mxu0 %v267
        %v381 = vpop.f32.mrf.mxu0
        %v382 = vadd.f32 0.0, %v381
        %v383 = vpop.f32.mrf.mxu0
        %384 = vmatprep.mubr.f32.mxu0 0.0
        %385 = vmatmul.mubr.f32.gmra.mxu0 %v268
        %v386 = vpop.f32.mrf.mxu0
        %v387 = vadd.f32 0.0, %v386
        %v388 = vpop.f32.mrf.mxu0
        %389 = vdwg.mxu0
        %v390 = vadd.f32 %v213, %v352
        %v391 = vadd.f32 %v214, %v357
        %v392 = vadd.f32 %v215, %v362
        %v393 = vadd.f32 %v216, %v367
        %v394 = vadd.f32 %v217, %v372
        %v395 = vadd.f32 %v218, %v377
        %v396 = vadd.f32 %v219, %v382
        %v397 = vadd.f32 %v220, %v387
        %398 = vset.pattern.permute.xlu0 1
        %399 = vperm.xlu0 %398, %v203
        %v400 = vpop.permute.xlu0 %399
        %401 = vset.pattern.permute.xlu0 1
        %402 = vperm.xlu0 %401, %v204
        %v403 = vpop.permute.xlu0 %402
        %404 = vset.pattern.permute.xlu0 1
        %405 = vperm.xlu0 %404, %v205
        %v406 = vpop.permute.xlu0 %405
        %407 = vset.pattern.permute.xlu0 1
        %408 = vperm.xlu0 %407, %v206
        %v409 = vpop.permute.xlu0 %408
        %410 = vset.pattern.permute.xlu0 1
        %411 = vperm.xlu0 %410, %v207
        %v412 = vpop.permute.xlu0 %411
        %413 = vset.pattern.permute.xlu0 1
        %414 = vperm.xlu0 %413, %v208
        %v415 = vpop.permute.xlu0 %414
        %416 = vset.pattern.permute.xlu0 1
        %417 = vperm.xlu0 %416, %v209
        %v418 = vpop.permute.xlu0 %417
        %419 = vset.pattern.permute.xlu0 1
        %420 = vperm.xlu0 %419, %v210
        %v421 = vpop.permute.xlu0 %420
        %vm422 = vcmp.eq.s32.totalorder %v212, %v400
        %vm423 = vcmp.eq.s32.totalorder %v212, %v403
        %vm424 = vcmp.eq.s32.totalorder %v212, %v406
        %vm425 = vcmp.eq.s32.totalorder %v212, %v409
        %vm426 = vcmp.eq.s32.totalorder %v212, %v412
        %vm427 = vcmp.eq.s32.totalorder %v212, %v415
        %vm428 = vcmp.eq.s32.totalorder %v212, %v418
        %vm429 = vcmp.eq.s32.totalorder %v212, %v421
        %v430 = vsel %vm422, 1, 0
        %v431 = vsel %vm423, 1, 0
        %v432 = vsel %vm424, 1, 0
        %v433 = vsel %vm425, 1, 0
        %v434 = vsel %vm426, 1, 0
        %v435 = vsel %vm427, 1, 0
        %v436 = vsel %vm428, 1, 0
        %v437 = vsel %vm429, 1, 0
        %v438 = vcvt.s32.f32 %v430
        %v439 = vcvt.s32.f32 %v431
        %v440 = vcvt.s32.f32 %v432
        %v441 = vcvt.s32.f32 %v433
        %v442 = vcvt.s32.f32 %v434
        %v443 = vcvt.s32.f32 %v435
        %v444 = vcvt.s32.f32 %v436
        %v445 = vcvt.s32.f32 %v437
        %s446 = scalar_lea.vmem [#allocation3], 128
        %v447 = vld [vmem:[%s446] sm:$0xff]
        %v448 = vld [vmem:[%s446 + $0x8] sm:$0xff]
        %v449 = vld [vmem:[%s446 + $0x10] sm:$0xff]
        %v450 = vld [vmem:[%s446 + $0x18] sm:$0xff]
        %v451 = vld [vmem:[%s446 + $0x20] sm:$0xff]
        %v452 = vld [vmem:[%s446 + $0x28] sm:$0xff]
        %v453 = vld [vmem:[%s446 + $0x30] sm:$0xff]
        %v454 = vld [vmem:[%s446 + $0x38] sm:$0xff]
        %v455 = vld [vmem:[%s446 + $0x40] sm:$0xff]
        %v456 = vld [vmem:[%s446 + $0x48] sm:$0xff]
        %v457 = vld [vmem:[%s446 + $0x50] sm:$0xff]
        %v458 = vld [vmem:[%s446 + $0x58] sm:$0xff]
        %v459 = vld [vmem:[%s446 + $0x60] sm:$0xff]
        %v460 = vld [vmem:[%s446 + $0x68] sm:$0xff]
        %v461 = vld [vmem:[%s446 + $0x70] sm:$0xff]
        %v462 = vld [vmem:[%s446 + $0x78] sm:$0xff]
        %463 = vmatprep.subr.mxu0 0.0
        %464 = vmatpush1.msra.mxu0 %v462
        %465 = vmatprep.subr.mxu0 0.0
        %466 = vmatpush1.msra.mxu0 %v461
        %467 = vmatprep.subr.mxu0 0.0
        %468 = vmatpush1.msra.mxu0 %v460
        %469 = vmatprep.subr.mxu0 0.0
        %470 = vmatpush1.msra.mxu0 %v459
        %471 = vmatprep.subr.mxu0 0.0
        %472 = vmatpush1.msra.mxu0 %v458
        %473 = vmatprep.subr.mxu0 0.0
        %474 = vmatpush1.msra.mxu0 %v457
        %475 = vmatprep.subr.mxu0 0.0
        %476 = vmatpush1.msra.mxu0 %v456
        %477 = vmatprep.subr.mxu0 0.0
        %478 = vmatpush1.msra.mxu0 %v455
        %479 = vmatprep.subr.mxu0 0.0
        %480 = vmatpush1.msra.mxu0 %v454
        %481 = vmatprep.subr.mxu0 0.0
        %482 = vmatpush1.msra.mxu0 %v453
        %483 = vmatprep.subr.mxu0 0.0
        %484 = vmatpush1.msra.mxu0 %v452
        %485 = vmatprep.subr.mxu0 0.0
        %486 = vmatpush1.msra.mxu0 %v451
        %487 = vmatprep.subr.mxu0 0.0
        %488 = vmatpush1.msra.mxu0 %v450
        %489 = vmatprep.subr.mxu0 0.0
        %490 = vmatpush1.msra.mxu0 %v449
        %491 = vmatprep.subr.mxu0 0.0
        %492 = vmatpush1.msra.mxu0 %v448
        %493 = vmatprep.subr.mxu0 0.0
        %494 = vmatpush1.msra.mxu0 %v447
        %495 = vmatprep.subr.mxu0 0.0
        %496 = vmatpush2.msra.mxu0 0.0
        %497 = vmatprep.subr.mxu0 0.0
        %498 = vmatpush2.msra.mxu0 0.0
        %499 = vmatprep.subr.mxu0 0.0
        %500 = vmatpush2.msra.mxu0 0.0
        %501 = vmatprep.subr.mxu0 0.0
        %502 = vmatpush2.msra.mxu0 0.0
        %503 = vmatprep.subr.mxu0 0.0
        %504 = vmatpush2.msra.mxu0 0.0
        %505 = vmatprep.subr.mxu0 0.0
        %506 = vmatpush2.msra.mxu0 0.0
        %507 = vmatprep.subr.mxu0 0.0
        %508 = vmatpush2.msra.mxu0 0.0
        %509 = vmatprep.subr.mxu0 0.0
        %510 = vmatpush2.msra.mxu0 0.0
        %511 = vmatprep.subr.mxu0 0.0
        %512 = vmatpush2.msra.mxu0 0.0
        %513 = vmatprep.subr.mxu0 0.0
        %514 = vmatpush2.msra.mxu0 0.0
        %515 = vmatprep.subr.mxu0 0.0
        %516 = vmatpush2.msra.mxu0 0.0
        %517 = vmatprep.subr.mxu0 0.0
        %518 = vmatpush2.msra.mxu0 0.0
        %519 = vmatprep.subr.mxu0 0.0
        %520 = vmatpush2.msra.mxu0 0.0
        %521 = vmatprep.subr.mxu0 0.0
        %522 = vmatpush2.msra.mxu0 0.0
        %523 = vmatprep.subr.mxu0 0.0
        %524 = vmatpush2.msra.mxu0 0.0
        %525 = vmatprep.subr.mxu0 0.0
        %526 = vmatpush2.msra.mxu0 0.0
        %527 = vmatprep.mubr.f32.mxu0 0.0
        %528 = vmatmul.mubr.f32.gmra.mxu0 %v438
        %v529 = vpop.f32.mrf.mxu0
        %v530 = vadd.f32 0.0, %v529
        %v531 = vpop.f32.mrf.mxu0
        %532 = vmatprep.mubr.f32.mxu0 0.0
        %533 = vmatmul.mubr.f32.gmra.mxu0 %v439
        %v534 = vpop.f32.mrf.mxu0
        %v535 = vadd.f32 0.0, %v534
        %v536 = vpop.f32.mrf.mxu0
        %537 = vmatprep.mubr.f32.mxu0 0.0
        %538 = vmatmul.mubr.f32.gmra.mxu0 %v440
        %v539 = vpop.f32.mrf.mxu0
        %v540 = vadd.f32 0.0, %v539
        %v541 = vpop.f32.mrf.mxu0
        %542 = vmatprep.mubr.f32.mxu0 0.0
        %543 = vmatmul.mubr.f32.gmra.mxu0 %v441
        %v544 = vpop.f32.mrf.mxu0
        %v545 = vadd.f32 0.0, %v544
        %v546 = vpop.f32.mrf.mxu0
        %547 = vmatprep.mubr.f32.mxu0 0.0
        %548 = vmatmul.mubr.f32.gmra.mxu0 %v442
        %v549 = vpop.f32.mrf.mxu0
        %v550 = vadd.f32 0.0, %v549
        %v551 = vpop.f32.mrf.mxu0
        %552 = vmatprep.mubr.f32.mxu0 0.0
        %553 = vmatmul.mubr.f32.gmra.mxu0 %v443
        %v554 = vpop.f32.mrf.mxu0
        %v555 = vadd.f32 0.0, %v554
        %v556 = vpop.f32.mrf.mxu0
        %557 = vmatprep.mubr.f32.mxu0 0.0
        %558 = vmatmul.mubr.f32.gmra.mxu0 %v444
        %v559 = vpop.f32.mrf.mxu0
        %v560 = vadd.f32 0.0, %v559
        %v561 = vpop.f32.mrf.mxu0
        %562 = vmatprep.mubr.f32.mxu0 0.0
        %563 = vmatmul.mubr.f32.gmra.mxu0 %v445
        %v564 = vpop.f32.mrf.mxu0
        %v565 = vadd.f32 0.0, %v564
        %v566 = vpop.f32.mrf.mxu0
        %567 = vdwg.mxu0
        %v568 = vadd.f32 %v390, %v530
        %v569 = vadd.f32 %v391, %v535
        %v570 = vadd.f32 %v392, %v540
        %v571 = vadd.f32 %v393, %v545
        %v572 = vadd.f32 %v394, %v550
        %v573 = vadd.f32 %v395, %v555
        %v574 = vadd.f32 %v396, %v560
        %v575 = vadd.f32 %v397, %v565
        %576 = vset.pattern.permute.xlu0 2
        %577 = vperm.xlu0 %576, %v203
        %v578 = vpop.permute.xlu0 %577
        %579 = vset.pattern.permute.xlu0 2
        %580 = vperm.xlu0 %579, %v204
        %v581 = vpop.permute.xlu0 %580
        %582 = vset.pattern.permute.xlu0 2
        %583 = vperm.xlu0 %582, %v205
        %v584 = vpop.permute.xlu0 %583
        %585 = vset.pattern.permute.xlu0 2
        %586 = vperm.xlu0 %585, %v206
        %v587 = vpop.permute.xlu0 %586
        %588 = vset.pattern.permute.xlu0 2
        %589 = vperm.xlu0 %588, %v207
        %v590 = vpop.permute.xlu0 %589
        %591 = vset.pattern.permute.xlu0 2
        %592 = vperm.xlu0 %591, %v208
        %v593 = vpop.permute.xlu0 %592
        %594 = vset.pattern.permute.xlu0 2
        %595 = vperm.xlu0 %594, %v209
        %v596 = vpop.permute.xlu0 %595
        %597 = vset.pattern.permute.xlu0 2
        %598 = vperm.xlu0 %597, %v210
        %v599 = vpop.permute.xlu0 %598
        %vm600 = vcmp.eq.s32.totalorder %v212, %v578
        %vm601 = vcmp.eq.s32.totalorder %v212, %v581
        %vm602 = vcmp.eq.s32.totalorder %v212, %v584
        %vm603 = vcmp.eq.s32.totalorder %v212, %v587
        %vm604 = vcmp.eq.s32.totalorder %v212, %v590
        %vm605 = vcmp.eq.s32.totalorder %v212, %v593
        %vm606 = vcmp.eq.s32.totalorder %v212, %v596
        %vm607 = vcmp.eq.s32.totalorder %v212, %v599
        %v608 = vsel %vm600, 1, 0
        %v609 = vsel %vm601, 1, 0
        %v610 = vsel %vm602, 1, 0
        %v611 = vsel %vm603, 1, 0
        %v612 = vsel %vm604, 1, 0
        %v613 = vsel %vm605, 1, 0
        %v614 = vsel %vm606, 1, 0
        %v615 = vsel %vm607, 1, 0
        %v616 = vcvt.s32.f32 %v608
        %v617 = vcvt.s32.f32 %v609
        %v618 = vcvt.s32.f32 %v610
        %v619 = vcvt.s32.f32 %v611
        %v620 = vcvt.s32.f32 %v612
        %v621 = vcvt.s32.f32 %v613
        %v622 = vcvt.s32.f32 %v614
        %v623 = vcvt.s32.f32 %v615
        %s624 = scalar_lea.vmem [#allocation3], 256
        %v625 = vld [vmem:[%s624] sm:$0xff]
        %v626 = vld [vmem:[%s624 + $0x8] sm:$0xff]
        %v627 = vld [vmem:[%s624 + $0x10] sm:$0xff]
        %v628 = vld [vmem:[%s624 + $0x18] sm:$0xff]
        %v629 = vld [vmem:[%s624 + $0x20] sm:$0xff]
        %v630 = vld [vmem:[%s624 + $0x28] sm:$0xff]
        %v631 = vld [vmem:[%s624 + $0x30] sm:$0xff]
        %v632 = vld [vmem:[%s624 + $0x38] sm:$0xff]
        %v633 = vld [vmem:[%s624 + $0x40] sm:$0xff]
        %v634 = vld [vmem:[%s624 + $0x48] sm:$0xff]
        %v635 = vld [vmem:[%s624 + $0x50] sm:$0xff]
        %v636 = vld [vmem:[%s624 + $0x58] sm:$0xff]
        %v637 = vld [vmem:[%s624 + $0x60] sm:$0xff]
        %v638 = vld [vmem:[%s624 + $0x68] sm:$0xff]
        %v639 = vld [vmem:[%s624 + $0x70] sm:$0xff]
        %v640 = vld [vmem:[%s624 + $0x78] sm:$0xff]
        %641 = vmatprep.subr.mxu0 0.0
        %642 = vmatpush1.msra.mxu0 %v640
        %643 = vmatprep.subr.mxu0 0.0
        %644 = vmatpush1.msra.mxu0 %v639
        %645 = vmatprep.subr.mxu0 0.0
        %646 = vmatpush1.msra.mxu0 %v638
        %647 = vmatprep.subr.mxu0 0.0
        %648 = vmatpush1.msra.mxu0 %v637
        %649 = vmatprep.subr.mxu0 0.0
        %650 = vmatpush1.msra.mxu0 %v636
        %651 = vmatprep.subr.mxu0 0.0
        %652 = vmatpush1.msra.mxu0 %v635
        %653 = vmatprep.subr.mxu0 0.0
        %654 = vmatpush1.msra.mxu0 %v634
        %655 = vmatprep.subr.mxu0 0.0
        %656 = vmatpush1.msra.mxu0 %v633
        %657 = vmatprep.subr.mxu0 0.0
        %658 = vmatpush1.msra.mxu0 %v632
        %659 = vmatprep.subr.mxu0 0.0
        %660 = vmatpush1.msra.mxu0 %v631
        %661 = vmatprep.subr.mxu0 0.0
        %662 = vmatpush1.msra.mxu0 %v630
        %663 = vmatprep.subr.mxu0 0.0
        %664 = vmatpush1.msra.mxu0 %v629
        %665 = vmatprep.subr.mxu0 0.0
        %666 = vmatpush1.msra.mxu0 %v628
        %667 = vmatprep.subr.mxu0 0.0
        %668 = vmatpush1.msra.mxu0 %v627
        %669 = vmatprep.subr.mxu0 0.0
        %670 = vmatpush1.msra.mxu0 %v626
        %671 = vmatprep.subr.mxu0 0.0
        %672 = vmatpush1.msra.mxu0 %v625
        %673 = vmatprep.subr.mxu0 0.0
        %674 = vmatpush2.msra.mxu0 0.0
        %675 = vmatprep.subr.mxu0 0.0
        %676 = vmatpush2.msra.mxu0 0.0
        %677 = vmatprep.subr.mxu0 0.0
        %678 = vmatpush2.msra.mxu0 0.0
        %679 = vmatprep.subr.mxu0 0.0
        %680 = vmatpush2.msra.mxu0 0.0
        %681 = vmatprep.subr.mxu0 0.0
        %682 = vmatpush2.msra.mxu0 0.0
        %683 = vmatprep.subr.mxu0 0.0
        %684 = vmatpush2.msra.mxu0 0.0
        %685 = vmatprep.subr.mxu0 0.0
        %686 = vmatpush2.msra.mxu0 0.0
        %687 = vmatprep.subr.mxu0 0.0
        %688 = vmatpush2.msra.mxu0 0.0
        %689 = vmatprep.subr.mxu0 0.0
        %690 = vmatpush2.msra.mxu0 0.0
        %691 = vmatprep.subr.mxu0 0.0
        %692 = vmatpush2.msra.mxu0 0.0
        %693 = vmatprep.subr.mxu0 0.0
        %694 = vmatpush2.msra.mxu0 0.0
        %695 = vmatprep.subr.mxu0 0.0
        %696 = vmatpush2.msra.mxu0 0.0
        %697 = vmatprep.subr.mxu0 0.0
        %698 = vmatpush2.msra.mxu0 0.0
        %699 = vmatprep.subr.mxu0 0.0
        %700 = vmatpush2.msra.mxu0 0.0
        %701 = vmatprep.subr.mxu0 0.0
        %702 = vmatpush2.msra.mxu0 0.0
        %703 = vmatprep.subr.mxu0 0.0
        %704 = vmatpush2.msra.mxu0 0.0
        %705 = vmatprep.mubr.f32.mxu0 0.0
        %706 = vmatmul.mubr.f32.gmra.mxu0 %v616
        %v707 = vpop.f32.mrf.mxu0
        %v708 = vadd.f32 0.0, %v707
        %v709 = vpop.f32.mrf.mxu0
        %710 = vmatprep.mubr.f32.mxu0 0.0
        %711 = vmatmul.mubr.f32.gmra.mxu0 %v617
        %v712 = vpop.f32.mrf.mxu0
        %v713 = vadd.f32 0.0, %v712
        %v714 = vpop.f32.mrf.mxu0
        %715 = vmatprep.mubr.f32.mxu0 0.0
        %716 = vmatmul.mubr.f32.gmra.mxu0 %v618
        %v717 = vpop.f32.mrf.mxu0
        %v718 = vadd.f32 0.0, %v717
        %v719 = vpop.f32.mrf.mxu0
        %720 = vmatprep.mubr.f32.mxu0 0.0
        %721 = vmatmul.mubr.f32.gmra.mxu0 %v619
        %v722 = vpop.f32.mrf.mxu0
        %v723 = vadd.f32 0.0, %v722
        %v724 = vpop.f32.mrf.mxu0
        %725 = vmatprep.mubr.f32.mxu0 0.0
        %726 = vmatmul.mubr.f32.gmra.mxu0 %v620
        %v727 = vpop.f32.mrf.mxu0
        %v728 = vadd.f32 0.0, %v727
        %v729 = vpop.f32.mrf.mxu0
        %730 = vmatprep.mubr.f32.mxu0 0.0
        %731 = vmatmul.mubr.f32.gmra.mxu0 %v621
        %v732 = vpop.f32.mrf.mxu0
        %v733 = vadd.f32 0.0, %v732
        %v734 = vpop.f32.mrf.mxu0
        %735 = vmatprep.mubr.f32.mxu0 0.0
        %736 = vmatmul.mubr.f32.gmra.mxu0 %v622
        %v737 = vpop.f32.mrf.mxu0
        %v738 = vadd.f32 0.0, %v737
        %v739 = vpop.f32.mrf.mxu0
        %740 = vmatprep.mubr.f32.mxu0 0.0
        %741 = vmatmul.mubr.f32.gmra.mxu0 %v623
        %v742 = vpop.f32.mrf.mxu0
        %v743 = vadd.f32 0.0, %v742
        %v744 = vpop.f32.mrf.mxu0
        %745 = vdwg.mxu0
        %v746 = vadd.f32 %v568, %v708
        %v747 = vadd.f32 %v569, %v713
        %v748 = vadd.f32 %v570, %v718
        %v749 = vadd.f32 %v571, %v723
        %v750 = vadd.f32 %v572, %v728
        %v751 = vadd.f32 %v573, %v733
        %v752 = vadd.f32 %v574, %v738
        %v753 = vadd.f32 %v575, %v743
        %754 = vset.pattern.permute.xlu0 3
        %755 = vperm.xlu0 %754, %v203
        %v756 = vpop.permute.xlu0 %755
        %757 = vset.pattern.permute.xlu0 3
        %758 = vperm.xlu0 %757, %v204
        %v759 = vpop.permute.xlu0 %758
        %760 = vset.pattern.permute.xlu0 3
        %761 = vperm.xlu0 %760, %v205
        %v762 = vpop.permute.xlu0 %761
        %763 = vset.pattern.permute.xlu0 3
        %764 = vperm.xlu0 %763, %v206
        %v765 = vpop.permute.xlu0 %764
        %766 = vset.pattern.permute.xlu0 3
        %767 = vperm.xlu0 %766, %v207
        %v768 = vpop.permute.xlu0 %767
        %769 = vset.pattern.permute.xlu0 3
        %770 = vperm.xlu0 %769, %v208
        %v771 = vpop.permute.xlu0 %770
        %772 = vset.pattern.permute.xlu0 3
        %773 = vperm.xlu0 %772, %v209
        %v774 = vpop.permute.xlu0 %773
        %775 = vset.pattern.permute.xlu0 3
        %776 = vperm.xlu0 %775, %v210
        %v777 = vpop.permute.xlu0 %776
        %vm778 = vcmp.eq.s32.totalorder %v212, %v756
        %vm779 = vcmp.eq.s32.totalorder %v212, %v759
        %vm780 = vcmp.eq.s32.totalorder %v212, %v762
        %vm781 = vcmp.eq.s32.totalorder %v212, %v765
        %vm782 = vcmp.eq.s32.totalorder %v212, %v768
        %vm783 = vcmp.eq.s32.totalorder %v212, %v771
        %vm784 = vcmp.eq.s32.totalorder %v212, %v774
        %vm785 = vcmp.eq.s32.totalorder %v212, %v777
        %v786 = vsel %vm778, 1, 0
        %v787 = vsel %vm779, 1, 0
        %v788 = vsel %vm780, 1, 0
        %v789 = vsel %vm781, 1, 0
        %v790 = vsel %vm782, 1, 0
        %v791 = vsel %vm783, 1, 0
        %v792 = vsel %vm784, 1, 0
        %v793 = vsel %vm785, 1, 0
        %v794 = vcvt.s32.f32 %v786
        %v795 = vcvt.s32.f32 %v787
        %v796 = vcvt.s32.f32 %v788
        %v797 = vcvt.s32.f32 %v789
        %v798 = vcvt.s32.f32 %v790
        %v799 = vcvt.s32.f32 %v791
        %v800 = vcvt.s32.f32 %v792
        %v801 = vcvt.s32.f32 %v793
        %s802 = scalar_lea.vmem [#allocation3], 384
        %v803 = vld [vmem:[%s802] sm:$0xff]
        %v804 = vld [vmem:[%s802 + $0x8] sm:$0xff]
        %v805 = vld [vmem:[%s802 + $0x10] sm:$0xff]
        %v806 = vld [vmem:[%s802 + $0x18] sm:$0xff]
        %v807 = vld [vmem:[%s802 + $0x20] sm:$0xff]
        %v808 = vld [vmem:[%s802 + $0x28] sm:$0xff]
        %v809 = vld [vmem:[%s802 + $0x30] sm:$0xff]
        %v810 = vld [vmem:[%s802 + $0x38] sm:$0xff]
        %v811 = vld [vmem:[%s802 + $0x40] sm:$0xff]
        %v812 = vld [vmem:[%s802 + $0x48] sm:$0xff]
        %v813 = vld [vmem:[%s802 + $0x50] sm:$0xff]
        %v814 = vld [vmem:[%s802 + $0x58] sm:$0xff]
        %v815 = vld [vmem:[%s802 + $0x60] sm:$0xff]
        %v816 = vld [vmem:[%s802 + $0x68] sm:$0xff]
        %v817 = vld [vmem:[%s802 + $0x70] sm:$0xff]
        %v818 = vld [vmem:[%s802 + $0x78] sm:$0xff]
        %819 = vmatprep.subr.mxu0 0.0
        %820 = vmatpush1.msra.mxu0 %v818
        %821 = vmatprep.subr.mxu0 0.0
        %822 = vmatpush1.msra.mxu0 %v817
        %823 = vmatprep.subr.mxu0 0.0
        %824 = vmatpush1.msra.mxu0 %v816
        %825 = vmatprep.subr.mxu0 0.0
        %826 = vmatpush1.msra.mxu0 %v815
        %827 = vmatprep.subr.mxu0 0.0
        %828 = vmatpush1.msra.mxu0 %v814
        %829 = vmatprep.subr.mxu0 0.0
        %830 = vmatpush1.msra.mxu0 %v813
        %831 = vmatprep.subr.mxu0 0.0
        %832 = vmatpush1.msra.mxu0 %v812
        %833 = vmatprep.subr.mxu0 0.0
        %834 = vmatpush1.msra.mxu0 %v811
        %835 = vmatprep.subr.mxu0 0.0
        %836 = vmatpush1.msra.mxu0 %v810
        %837 = vmatprep.subr.mxu0 0.0
        %838 = vmatpush1.msra.mxu0 %v809
        %839 = vmatprep.subr.mxu0 0.0
        %840 = vmatpush1.msra.mxu0 %v808
        %841 = vmatprep.subr.mxu0 0.0
        %842 = vmatpush1.msra.mxu0 %v807
        %843 = vmatprep.subr.mxu0 0.0
        %844 = vmatpush1.msra.mxu0 %v806
        %845 = vmatprep.subr.mxu0 0.0
        %846 = vmatpush1.msra.mxu0 %v805
        %847 = vmatprep.subr.mxu0 0.0
        %848 = vmatpush1.msra.mxu0 %v804
        %849 = vmatprep.subr.mxu0 0.0
        %850 = vmatpush1.msra.mxu0 %v803
        %851 = vmatprep.subr.mxu0 0.0
        %852 = vmatpush2.msra.mxu0 0.0
        %853 = vmatprep.subr.mxu0 0.0
        %854 = vmatpush2.msra.mxu0 0.0
        %855 = vmatprep.subr.mxu0 0.0
        %856 = vmatpush2.msra.mxu0 0.0
        %857 = vmatprep.subr.mxu0 0.0
        %858 = vmatpush2.msra.mxu0 0.0
        %859 = vmatprep.subr.mxu0 0.0
        %860 = vmatpush2.msra.mxu0 0.0
        %861 = vmatprep.subr.mxu0 0.0
        %862 = vmatpush2.msra.mxu0 0.0
        %863 = vmatprep.subr.mxu0 0.0
        %864 = vmatpush2.msra.mxu0 0.0
        %865 = vmatprep.subr.mxu0 0.0
        %866 = vmatpush2.msra.mxu0 0.0
        %867 = vmatprep.subr.mxu0 0.0
        %868 = vmatpush2.msra.mxu0 0.0
        %869 = vmatprep.subr.mxu0 0.0
        %870 = vmatpush2.msra.mxu0 0.0
        %871 = vmatprep.subr.mxu0 0.0
        %872 = vmatpush2.msra.mxu0 0.0
        %873 = vmatprep.subr.mxu0 0.0
        %874 = vmatpush2.msra.mxu0 0.0
        %875 = vmatprep.subr.mxu0 0.0
        %876 = vmatpush2.msra.mxu0 0.0
        %877 = vmatprep.subr.mxu0 0.0
        %878 = vmatpush2.msra.mxu0 0.0
        %879 = vmatprep.subr.mxu0 0.0
        %880 = vmatpush2.msra.mxu0 0.0
        %881 = vmatprep.subr.mxu0 0.0
        %882 = vmatpush2.msra.mxu0 0.0
        %883 = vmatprep.mubr.f32.mxu0 0.0
        %884 = vmatmul.mubr.f32.gmra.mxu0 %v794
        %v885 = vpop.f32.mrf.mxu0
        %v886 = vadd.f32 0.0, %v885
        %v887 = vpop.f32.mrf.mxu0
        %888 = vmatprep.mubr.f32.mxu0 0.0
        %889 = vmatmul.mubr.f32.gmra.mxu0 %v795
        %v890 = vpop.f32.mrf.mxu0
        %v891 = vadd.f32 0.0, %v890
        %v892 = vpop.f32.mrf.mxu0
        %893 = vmatprep.mubr.f32.mxu0 0.0
        %894 = vmatmul.mubr.f32.gmra.mxu0 %v796
        %v895 = vpop.f32.mrf.mxu0
        %v896 = vadd.f32 0.0, %v895
        %v897 = vpop.f32.mrf.mxu0
        %898 = vmatprep.mubr.f32.mxu0 0.0
        %899 = vmatmul.mubr.f32.gmra.mxu0 %v797
        %v900 = vpop.f32.mrf.mxu0
        %v901 = vadd.f32 0.0, %v900
        %v902 = vpop.f32.mrf.mxu0
        %903 = vmatprep.mubr.f32.mxu0 0.0
        %904 = vmatmul.mubr.f32.gmra.mxu0 %v798
        %v905 = vpop.f32.mrf.mxu0
        %v906 = vadd.f32 0.0, %v905
        %v907 = vpop.f32.mrf.mxu0
        %908 = vmatprep.mubr.f32.mxu0 0.0
        %909 = vmatmul.mubr.f32.gmra.mxu0 %v799
        %v910 = vpop.f32.mrf.mxu0
        %v911 = vadd.f32 0.0, %v910
        %v912 = vpop.f32.mrf.mxu0
        %913 = vmatprep.mubr.f32.mxu0 0.0
        %914 = vmatmul.mubr.f32.gmra.mxu0 %v800
        %v915 = vpop.f32.mrf.mxu0
        %v916 = vadd.f32 0.0, %v915
        %v917 = vpop.f32.mrf.mxu0
        %918 = vmatprep.mubr.f32.mxu0 0.0
        %919 = vmatmul.mubr.f32.gmra.mxu0 %v801
        %v920 = vpop.f32.mrf.mxu0
        %v921 = vadd.f32 0.0, %v920
        %v922 = vpop.f32.mrf.mxu0
        %923 = vdwg.mxu0
        %v924 = vadd.f32 %v746, %v886
        %v925 = vadd.f32 %v747, %v891
        %v926 = vadd.f32 %v748, %v896
        %v927 = vadd.f32 %v749, %v901
        %v928 = vadd.f32 %v750, %v906
        %v929 = vadd.f32 %v751, %v911
        %v930 = vadd.f32 %v752, %v916
        %v931 = vadd.f32 %v753, %v921
        %932 = vst [vmem:[#allocation2] sm:$0xff] %v924
        %933 = vst [vmem:[#allocation2 + $0x8] sm:$0xff] %v925
        %934 = vst [vmem:[#allocation2 + $0x10] sm:$0xff] %v926
        %935 = vst [vmem:[#allocation2 + $0x18] sm:$0xff] %v927
        %936 = vst [vmem:[#allocation2 + $0x20] sm:$0xff] %v928
        %937 = vst [vmem:[#allocation2 + $0x28] sm:$0xff] %v929
        %938 = vst [vmem:[#allocation2 + $0x30] sm:$0xff] %v930
        %939 = vst [vmem:[#allocation2 + $0x38] sm:$0xff] %v931
        // Predicated region
        $region37: #{tpu_custom_call.1} parent=27 // pred_check
          %p940 = pneg %p181
        $region38: #{tpu_custom_call.1} parent=27 // pred_check_branch
          %942 = sbr.rel (%p940) target = $region40
        $region39: #{tpu_custom_call.1} parent=27 // pred_region
          %v943 = vld [vmem:[#allocation2] sm:$0xff]
          %v944 = vld [vmem:[#allocation2 + $0x8] sm:$0xff]
          %v945 = vld [vmem:[#allocation2 + $0x10] sm:$0xff]
          %v946 = vld [vmem:[#allocation2 + $0x18] sm:$0xff]
          %v947 = vld [vmem:[#allocation2 + $0x20] sm:$0xff]
          %v948 = vld [vmem:[#allocation2 + $0x28] sm:$0xff]
          %v949 = vld [vmem:[#allocation2 + $0x30] sm:$0xff]
          %v950 = vld [vmem:[#allocation2 + $0x38] sm:$0xff]
          %951 = vst [vmem:[%s172] sm:$0xff] %v943
          %952 = vst [vmem:[%s172 + $0x8] sm:$0xff] %v944
          %953 = vst [vmem:[%s172 + $0x10] sm:$0xff] %v945
          %954 = vst [vmem:[%s172 + $0x18] sm:$0xff] %v946
          %955 = vst [vmem:[%s172 + $0x20] sm:$0xff] %v947
          %956 = vst [vmem:[%s172 + $0x28] sm:$0xff] %v948
          %957 = vst [vmem:[%s172 + $0x30] sm:$0xff] %v949
          %958 = vst [vmem:[%s172 + $0x38] sm:$0xff] %v950
        $region40: #{tpu_custom_call.1} parent=27 // pred_fallthru
          _
        %s959 = sand.u32 %s89, 1
        %s960 = scalar_lea.sflag [#allocation5], %s959
        %s961 = sand.u32 %s89, 1
        %s962 = smul.addr %s961, 64
        %s963 = scalar_lea.vmem [#allocation6], %s962
        // Predicated region
        $region41: #{tpu_custom_call.1} parent=27 // pred_check
          %p964 = pneg %p99
        $region42: #{tpu_custom_call.1} parent=27 // pred_check_branch
          %966 = sbr.rel (%p964) target = $region44
        $region43: #{tpu_custom_call.1} parent=27 // pred_region
          %s967 = smul.u32 8, %s21
          %s969 = ssub.s32 1024, 1024
          %970 = vsyncadd %s960, %s969
          %s971 = smul.addr %s967, 128
          %s972 = scalar_lea.hbm %s2, %s971
          %s973 = sshll.u32 %s963, 4
          %s974 = int_to_ptr.vmem [resolvable:$true] %s973
          %979 = dma.vmem_to_hbm [thread:$0]  %s974, 1024, %s972, %s960, 128, 128, 8
        $region44: #{tpu_custom_call.1} parent=27 // pred_fallthru
          _
      $region28: #{tpu_custom_call.1} parent=5 // pred_fallthru
        _
      %p980 = scmp.le.s32.totalorder 2, %s12
      // Predicated region
      $region45: #{tpu_custom_call.1} parent=5 // pred_check
        %p981 = pneg %p980
      $region46: #{tpu_custom_call.1} parent=5 // pred_check_branch
        %983 = sbr.rel (%p981) target = $region48
      $region47: #{tpu_custom_call.1} parent=5 // pred_region
        %s984 = ssub.s32 %s12, 2
        // Predicated region
        $region49: #{tpu_custom_call.1} parent=47 // pred_check
          %p985 = pneg %p105
        $region50: #{tpu_custom_call.1} parent=47 // pred_check_branch
          %987 = sbr.rel (%p985) target = $region52
        $region51: #{tpu_custom_call.1} parent=47 // pred_region
          %s988 = sand.u32 %s90, 1
          %s989 = scalar_lea.sflag [#allocation5], %s988
          %s990 = sand.u32 %s90, 1
          %s991 = smul.addr %s990, 64
          %s992 = scalar_lea.vmem [#allocation6], %s991
          %993 = dma.done %s989, 1024
        $region52: #{tpu_custom_call.1} parent=47 // pred_fallthru
          _
      $region48: #{tpu_custom_call.1} parent=5 // pred_fallthru
        _
    $region6: #{tpu_custom_call.1} parent=1 // loop_footer
      %s16 = sadd.s32 1, %s12
    $region7: #{tpu_custom_call.1} parent=1 // loop_footer_branch
      %11 = sbr.rel target = $region3
    $region8: #{tpu_custom_call.1} parent=1 // loop_exit
      _
    %994 = vsyncpa [#allocation4], 1
    %s995 = scalar_lea.sflag [#allocation4], 1
    %996 = vsyncpa %s995, 1
    %997 = vsyncpa [#allocation5], 1
    %s998 = scalar_lea.sflag [#allocation5], 1
    %999 = vsyncpa %s998, 1

</llo_original>
